<compile_context>
chip_gen: v6e
topology: v6e:2x2x1
jax: 0.10.0
libtpu: 0.0.40
codegen_flags: <defaults>
</compile_context>

<pallas_src>
import jax
import jax.numpy as jnp
from jax import lax
from jax.experimental import pallas as pl
from jax.experimental.pallas import tpu as pltpu


# ----------------------------- fused model kernel -----------------------------

def _fused_lstm_fc_kernel(x_ref, wih0_ref, b0_ref, w0w_ref, b1_ref,
                          whh1_ref, wfc_ref, bfc_ref, out_ref):
    """Whole 2-layer LSTM + FC forward in one kernel invocation (no grid).

    x_ref    : (T, B, Dp)  time-major input (D zero-padded to 8-aligned Dp)
    wih0_ref : (Dp, 4H)    layer-0 input weight (pre-transposed; rows >= D are 0)
    b0_ref   : (1, 4H)     layer-0 combined bias
    w0w_ref  : (H, 8H)     lane-concatenated [W_hh0 | W_ih1]
    b1_ref   : (1, 4H)     layer-1 combined bias
    whh1_ref : (H, 4H)     layer-1 recurrent weight (pre-transposed)
    wfc_ref  : (H, C)      FC weight (pre-transposed)
    bfc_ref  : (1, C)      FC bias
    out_ref  : (B, C)      logits
    """
    T, B, _ = x_ref.shape
    H = whh1_ref.shape[0]
    H4 = 4 * H

    # Hoist weight/bias loads out of the unrolled wavefront loop.
    wih0 = wih0_ref[...]
    b0 = b0_ref[...]
    w0w = w0w_ref[...]
    b1 = b1_ref[...]
    whh1 = whh1_ref[...]

    def cell(gates, c):
        # PyTorch gate order i|f|g|o in 32-lane groups of one (B, 4H) tile.
        # One full-width sigmoid + one full-width tanh (2 EUP passes instead of
        # 4 partial-vreg passes); the static 32-lane extracts below lower to
        # the same XLU lane shifts an explicit roll would emit.
        sig = jax.nn.sigmoid(gates)
        th = jnp.tanh(gates)
        i_g = sig[:, 0 * H:1 * H]
        f_g = sig[:, 1 * H:2 * H]
        g_g = th[:, 2 * H:3 * H]
        o_g = sig[:, 3 * H:4 * H]
        c_new = f_g * c + i_g * g_g
        h_new = o_g * jnp.tanh(c_new)
        return h_new, c_new

    zeros = jnp.zeros((B, H), jnp.float32)

    # ---- peeled layer-0 step t=0 (h0_{-1} = 0  =>  no recurrent matmul).
    gates0 = jnp.dot(x_ref[0], wih0, preferred_element_type=jnp.float32) + b0
    h0, c0 = cell(gates0, zeros)
    h1, c1 = zeros, zeros

    # ---- wavefront: iteration t runs layer-0 step t and layer-1 step t-1.
    # Entering iteration t: h0 = h0_{t-1}, h1 = h1_{t-2}.  The single wide
    # matmul h0 @ [W_hh0 | W_ih1] yields both the layer-0 gate contribution for
    # step t (lanes [:4H]) and the layer-1 input projection for step t-1
    # (lanes [4H:]).  The two cell updates are independent chains, so their
    # MXU/EUP latencies overlap under the unrolled schedule.
    def step(t, carry):
        h0, c0, h1, c1 = carry
        wide = jnp.dot(h0, w0w, preferred_element_type=jnp.float32)       # (B, 8H)
        # Off-the-serial-chain input projection for layer-0 step t.
        px = jnp.dot(x_ref[t], wih0, preferred_element_type=jnp.float32)  # (B, 4H)
        # Layer-1 step t-1.
        gates1 = wide[:, H4:] + b1 + jnp.dot(
            h1, whh1, preferred_element_type=jnp.float32)
        h1n, c1n = cell(gates1, c1)
        # Layer-0 step t.
        h0n, c0n = cell(px + b0 + wide[:, :H4], c0)
        return (h0n, c0n, h1n, c1n)

    h0, c0, h1, c1 = lax.fori_loop(1, T, step, (h0, c0, h1, c1), unroll=True)

    # ---- epilogue: layer-1 step T-1 consumes h0_{T-1}.
    wide = jnp.dot(h0, w0w, preferred_element_type=jnp.float32)
    gates1 = wide[:, H4:] + b1 + jnp.dot(
        h1, whh1, preferred_element_type=jnp.float32)
    h1, _ = cell(gates1, c1)

    # ---- FC on the last time step of the top layer.
    out_ref[...] = (
        jnp.dot(h1, wfc_ref[...], preferred_element_type=jnp.float32)
        + bfc_ref[...])


# ------------------------------- forward wrapper -------------------------------

def _fused_forward(x, params):
    """x: (B, T, input_size) batch-first, like the PyTorch module."""
    x = x.astype(jnp.float32)
    B, T, D = x.shape
    (w_ih0, w_hh0, b0), (w_ih1, w_hh1, b1) = params["lstm"]
    w_fc, b_fc = params["fc_w"], params["fc_b"]
    H = w_hh0.shape[0]
    C = w_fc.shape[1]

    # Time-major input for the in-kernel recurrence.  Zero-pad the contraction
    # dim (28 -> 32) so every in-kernel matmul has an 8-aligned K; the matching
    # weight rows are zero so the math is unchanged.  This tiny transpose/pad
    # copy is the only op left outside the fused kernel.
    d_pad = (-D) % 8
    x_tm = jnp.transpose(x, (1, 0, 2))                       # (T, B, D)
    if d_pad:
        x_tm = jnp.pad(x_tm, ((0, 0), (0, 0), (0, d_pad)))   # (T, B, Dp)
        w_ih0 = jnp.pad(w_ih0, ((0, d_pad), (0, 0)))         # (Dp, 4H)

    # Lane-concatenated layer-0 step weight [W_hh0 | W_ih1] (H, 8H): one wide
    # MXU matmul per wavefront step yields both the layer-0 recurrent gates
    # and the layer-1 input projection for the previous step.
    w0_wide = jnp.concatenate([w_hh0, w_ih1], axis=1)        # (H, 8H)

    vmem_spec = pl.BlockSpec(memory_space=pltpu.MemorySpace.VMEM)
    return pl.pallas_call(
        _fused_lstm_fc_kernel,
        out_shape=jax.ShapeDtypeStruct((B, C), jnp.float32),
        in_specs=[vmem_spec] * 8,
        out_specs=vmem_spec,
    )(x_tm, w_ih0, b0, w0_wide, b1, w_hh1, w_fc, b_fc)


rnn_lstm_forward = jax.jit(_fused_forward)


# ------------------------------ pure-JAX reference ----------------------------

def rnn_lstm_reference(x, params):
    x_tm = jnp.transpose(x, (1, 0, 2)).astype(jnp.float32)   # (T, B, D)

    def run_layer(h_seq, layer_params):
        w_ih, w_hh, b = layer_params
        H = w_hh.shape[0]
        B = h_seq.shape[1]

        def step(carry, x_t):
            h, c = carry
            gates = x_t @ w_ih + h @ w_hh + b[0]
            i_g = jax.nn.sigmoid(gates[:, 0 * H:1 * H])
            f_g = jax.nn.sigmoid(gates[:, 1 * H:2 * H])
            g_g = jnp.tanh(gates[:, 2 * H:3 * H])
            o_g = jax.nn.sigmoid(gates[:, 3 * H:4 * H])
            c_new = f_g * c + i_g * g_g
            h_new = o_g * jnp.tanh(c_new)
            return (h_new, c_new), h_new

        init = (jnp.zeros((B, H), jnp.float32),
                jnp.zeros((B, H), jnp.float32))
        _, h_out = lax.scan(step, init, h_seq)
        return h_out

    h_seq = x_tm
    for lp in params["lstm"]:
        h_seq = run_layer(h_seq, lp)
    return h_seq[-1] @ params["fc_w"] + params["fc_b"][0]


# --------------------------------- parameters ---------------------------------

def init_params(key, input_size, hidden, num_layers, num_classes):
    """Weights stored PRE-TRANSPOSED: w_ih (D_in, 4H), w_hh (H, 4H), fc_w (H, C)."""
    assert num_layers == 2, "fused kernel is specialized to the module's 2 layers"
    k = 1.0 / jnp.sqrt(hidden)
    lstm_params = []
    for layer in range(num_layers):
        d_in = input_size if layer == 0 else hidden
        key, k1, k2, k3, k4 = jax.random.split(key, 5)
        w_ih = jax.random.uniform(k1, (4 * hidden, d_in), jnp.float32, -k, k).T
        w_hh = jax.random.uniform(k2, (4 * hidden, hidden), jnp.float32, -k, k).T
        b_ih = jax.random.uniform(k3, (4 * hidden,), jnp.float32, -k, k)
        b_hh = jax.random.uniform(k4, (4 * hidden,), jnp.float32, -k, k)
        lstm_params.append((w_ih, w_hh, (b_ih + b_hh).reshape(1, 4 * hidden)))

    key, k5, k6 = jax.random.split(key, 3)
    kf = 1.0 / jnp.sqrt(hidden)
    fc_w = jax.random.uniform(k5, (num_classes, hidden), jnp.float32, -kf, kf).T
    fc_b = jax.random.uniform(k6, (num_classes,), jnp.float32, -kf, kf).reshape(1, -1)
    return {"lstm": lstm_params, "fc_w": fc_w, "fc_b": fc_b}


# ------------------------------------ main ------------------------------------

if __name__ == "__main__":
    batch = 2
    seq_len = 8
    input_size = 28
    hidden = 32
    num_layers = 2
    num_classes = 10

    key = jax.random.PRNGKey(0)
    key, xkey, pkey = jax.random.split(key, 3)

    x = jax.random.normal(xkey, (batch, seq_len, input_size), jnp.float32)
    params = init_params(pkey, input_size, hidden, num_layers, num_classes)

    out = rnn_lstm_forward(x, params)
    out = jax.block_until_ready(out)

    ref = rnn_lstm_reference(x, params)
    assert out.shape == (batch, num_classes)
    assert jnp.allclose(out, ref, atol=1e-4, rtol=1e-4), (
        f"mismatch: max abs err {jnp.max(jnp.abs(out - ref))}")

    print("KERNEL_OK")
</pallas_src>

<mosaic_0001>
module attributes {stable_mosaic.version = 11 : i64} {
  func.func @_fused_lstm_fc_kernel(%arg0: memref<8x2x32xf32, #tpu.memory_space<vmem>>, %arg1: memref<32x128xf32, #tpu.memory_space<vmem>>, %arg2: memref<1x128xf32, #tpu.memory_space<vmem>>, %arg3: memref<32x256xf32, #tpu.memory_space<vmem>>, %arg4: memref<1x128xf32, #tpu.memory_space<vmem>>, %arg5: memref<32x128xf32, #tpu.memory_space<vmem>>, %arg6: memref<32x10xf32, #tpu.memory_space<vmem>>, %arg7: memref<1x10xf32, #tpu.memory_space<vmem>>, %arg8: memref<2x10xf32, #tpu.memory_space<vmem>>) attributes {dimension_semantics = [], scalar_prefetch = 0 : i64, scratch_operands = 0 : i64, tpu.core_type = #tpu.core_type<tc>} {
    %c0 = arith.constant 0 : index
    %c0_0 = arith.constant 0 : index
    %0 = vector.load %arg1[%c0, %c0_0] : memref<32x128xf32, #tpu.memory_space<vmem>>, vector<32x128xf32>
    %c0_1 = arith.constant 0 : index
    %c0_2 = arith.constant 0 : index
    %1 = vector.load %arg2[%c0_1, %c0_2] : memref<1x128xf32, #tpu.memory_space<vmem>>, vector<1x128xf32>
    %c0_3 = arith.constant 0 : index
    %c0_4 = arith.constant 0 : index
    %2 = vector.load %arg3[%c0_3, %c0_4] : memref<32x256xf32, #tpu.memory_space<vmem>>, vector<32x256xf32>
    %c0_5 = arith.constant 0 : index
    %c0_6 = arith.constant 0 : index
    %3 = vector.load %arg4[%c0_5, %c0_6] : memref<1x128xf32, #tpu.memory_space<vmem>>, vector<1x128xf32>
    %c0_7 = arith.constant 0 : index
    %c0_8 = arith.constant 0 : index
    %4 = vector.load %arg5[%c0_7, %c0_8] : memref<32x128xf32, #tpu.memory_space<vmem>>, vector<32x128xf32>
    %cst = arith.constant 0.000000e+00 : f32
    %5 = vector.broadcast %cst : f32 to vector<2x32xf32>
    %c0_9 = arith.constant 0 : index
    %c0_10 = arith.constant 0 : index
    %c0_11 = arith.constant 0 : index
    %6 = vector.load %arg0[%c0_9, %c0_10, %c0_11] : memref<8x2x32xf32, #tpu.memory_space<vmem>>, vector<1x2x32xf32>
    %7 = vector.shape_cast %6 : vector<1x2x32xf32> to vector<2x32xf32>
    %cst_12 = arith.constant dense<0.000000e+00> : vector<2x128xf32>
    %8 = tpu.matmul %7, %0, %cst_12 {dimension_numbers = #tpu.dot_dimension_numbers<[1], [0], [0], [1], [0, 0, 1, 1], [], []>} : vector<2x32xf32>, vector<32x128xf32>, vector<2x128xf32> -> vector<2x128xf32>
    %9 = vector.broadcast %1 : vector<1x128xf32> to vector<2x128xf32>
    %10 = arith.addf %8, %9 : vector<2x128xf32>
    %11 = arith.negf %10 : vector<2x128xf32>
    %12 = math.exp %11 : vector<2x128xf32>
    %cst_13 = arith.constant 1.000000e+00 : f32
    %13 = vector.broadcast %cst_13 : f32 to vector<2x128xf32>
    %14 = arith.addf %13, %12 : vector<2x128xf32>
    %15 = arith.divf %13, %14 : vector<2x128xf32>
    %16 = math.tanh %10 : vector<2x128xf32>
    %17 = vector.extract_strided_slice %15 {offsets = [0, 0], sizes = [2, 32], strides = [1, 1]} : vector<2x128xf32> to vector<2x32xf32>
    %18 = vector.extract_strided_slice %15 {offsets = [0, 32], sizes = [2, 32], strides = [1, 1]} : vector<2x128xf32> to vector<2x32xf32>
    %19 = vector.extract_strided_slice %16 {offsets = [0, 64], sizes = [2, 32], strides = [1, 1]} : vector<2x128xf32> to vector<2x32xf32>
    %20 = vector.extract_strided_slice %15 {offsets = [0, 96], sizes = [2, 32], strides = [1, 1]} : vector<2x128xf32> to vector<2x32xf32>
    %21 = arith.mulf %18, %5 : vector<2x32xf32>
    %22 = arith.mulf %17, %19 : vector<2x32xf32>
    %23 = arith.addf %21, %22 : vector<2x32xf32>
    %24 = math.tanh %23 : vector<2x32xf32>
    %25 = arith.mulf %20, %24 : vector<2x32xf32>
    %c1_i32 = arith.constant 1 : i32
    %cst_14 = arith.constant dense<0.000000e+00> : vector<2x256xf32>
    %26 = tpu.matmul %25, %2, %cst_14 {dimension_numbers = #tpu.dot_dimension_numbers<[1], [0], [0], [1], [0, 0, 1, 1], [], []>} : vector<2x32xf32>, vector<32x256xf32>, vector<2x256xf32> -> vector<2x256xf32>
    %27 = arith.index_cast %c1_i32 : i32 to index
    %c0_15 = arith.constant 0 : index
    %c0_16 = arith.constant 0 : index
    %28 = vector.load %arg0[%27, %c0_15, %c0_16] : memref<8x2x32xf32, #tpu.memory_space<vmem>>, vector<1x2x32xf32>
    %29 = vector.shape_cast %28 : vector<1x2x32xf32> to vector<2x32xf32>
    %cst_17 = arith.constant dense<0.000000e+00> : vector<2x128xf32>
    %30 = tpu.matmul %29, %0, %cst_17 {dimension_numbers = #tpu.dot_dimension_numbers<[1], [0], [0], [1], [0, 0, 1, 1], [], []>} : vector<2x32xf32>, vector<32x128xf32>, vector<2x128xf32> -> vector<2x128xf32>
    %31 = vector.extract_strided_slice %26 {offsets = [0, 128], sizes = [2, 128], strides = [1, 1]} : vector<2x256xf32> to vector<2x128xf32>
    %32 = vector.broadcast %3 : vector<1x128xf32> to vector<2x128xf32>
    %33 = arith.addf %31, %32 : vector<2x128xf32>
    %cst_18 = arith.constant dense<0.000000e+00> : vector<2x128xf32>
    %34 = tpu.matmul %5, %4, %cst_18 {dimension_numbers = #tpu.dot_dimension_numbers<[1], [0], [0], [1], [0, 0, 1, 1], [], []>} : vector<2x32xf32>, vector<32x128xf32>, vector<2x128xf32> -> vector<2x128xf32>
    %35 = arith.addf %33, %34 : vector<2x128xf32>
    %36 = arith.negf %35 : vector<2x128xf32>
    %37 = math.exp %36 : vector<2x128xf32>
    %cst_19 = arith.constant 1.000000e+00 : f32
    %38 = vector.broadcast %cst_19 : f32 to vector<2x128xf32>
    %39 = arith.addf %38, %37 : vector<2x128xf32>
    %40 = arith.divf %38, %39 : vector<2x128xf32>
    %41 = math.tanh %35 : vector<2x128xf32>
    %42 = vector.extract_strided_slice %40 {offsets = [0, 0], sizes = [2, 32], strides = [1, 1]} : vector<2x128xf32> to vector<2x32xf32>
    %43 = vector.extract_strided_slice %40 {offsets = [0, 32], sizes = [2, 32], strides = [1, 1]} : vector<2x128xf32> to vector<2x32xf32>
    %44 = vector.extract_strided_slice %41 {offsets = [0, 64], sizes = [2, 32], strides = [1, 1]} : vector<2x128xf32> to vector<2x32xf32>
    %45 = vector.extract_strided_slice %40 {offsets = [0, 96], sizes = [2, 32], strides = [1, 1]} : vector<2x128xf32> to vector<2x32xf32>
    %46 = arith.mulf %43, %5 : vector<2x32xf32>
    %47 = arith.mulf %42, %44 : vector<2x32xf32>
    %48 = arith.addf %46, %47 : vector<2x32xf32>
    %49 = math.tanh %48 : vector<2x32xf32>
    %50 = arith.mulf %45, %49 : vector<2x32xf32>
    %51 = vector.broadcast %1 : vector<1x128xf32> to vector<2x128xf32>
    %52 = arith.addf %30, %51 : vector<2x128xf32>
    %53 = vector.extract_strided_slice %26 {offsets = [0, 0], sizes = [2, 128], strides = [1, 1]} : vector<2x256xf32> to vector<2x128xf32>
    %54 = arith.addf %52, %53 : vector<2x128xf32>
    %55 = arith.negf %54 : vector<2x128xf32>
    %56 = math.exp %55 : vector<2x128xf32>
    %cst_20 = arith.constant 1.000000e+00 : f32
    %57 = vector.broadcast %cst_20 : f32 to vector<2x128xf32>
    %58 = arith.addf %57, %56 : vector<2x128xf32>
    %59 = arith.divf %57, %58 : vector<2x128xf32>
    %60 = math.tanh %54 : vector<2x128xf32>
    %61 = vector.extract_strided_slice %59 {offsets = [0, 0], sizes = [2, 32], strides = [1, 1]} : vector<2x128xf32> to vector<2x32xf32>
    %62 = vector.extract_strided_slice %59 {offsets = [0, 32], sizes = [2, 32], strides = [1, 1]} : vector<2x128xf32> to vector<2x32xf32>
    %63 = vector.extract_strided_slice %60 {offsets = [0, 64], sizes = [2, 32], strides = [1, 1]} : vector<2x128xf32> to vector<2x32xf32>
    %64 = vector.extract_strided_slice %59 {offsets = [0, 96], sizes = [2, 32], strides = [1, 1]} : vector<2x128xf32> to vector<2x32xf32>
    %65 = arith.mulf %62, %23 : vector<2x32xf32>
    %66 = arith.mulf %61, %63 : vector<2x32xf32>
    %67 = arith.addf %65, %66 : vector<2x32xf32>
    %68 = math.tanh %67 : vector<2x32xf32>
    %69 = arith.mulf %64, %68 : vector<2x32xf32>
    %c2_i32 = arith.constant 2 : i32
    %cst_21 = arith.constant dense<0.000000e+00> : vector<2x256xf32>
    %70 = tpu.matmul %69, %2, %cst_21 {dimension_numbers = #tpu.dot_dimension_numbers<[1], [0], [0], [1], [0, 0, 1, 1], [], []>} : vector<2x32xf32>, vector<32x256xf32>, vector<2x256xf32> -> vector<2x256xf32>
    %71 = arith.index_cast %c2_i32 : i32 to index
    %c0_22 = arith.constant 0 : index
    %c0_23 = arith.constant 0 : index
    %72 = vector.load %arg0[%71, %c0_22, %c0_23] : memref<8x2x32xf32, #tpu.memory_space<vmem>>, vector<1x2x32xf32>
    %73 = vector.shape_cast %72 : vector<1x2x32xf32> to vector<2x32xf32>
    %cst_24 = arith.constant dense<0.000000e+00> : vector<2x128xf32>
    %74 = tpu.matmul %73, %0, %cst_24 {dimension_numbers = #tpu.dot_dimension_numbers<[1], [0], [0], [1], [0, 0, 1, 1], [], []>} : vector<2x32xf32>, vector<32x128xf32>, vector<2x128xf32> -> vector<2x128xf32>
    %75 = vector.extract_strided_slice %70 {offsets = [0, 128], sizes = [2, 128], strides = [1, 1]} : vector<2x256xf32> to vector<2x128xf32>
    %76 = vector.broadcast %3 : vector<1x128xf32> to vector<2x128xf32>
    %77 = arith.addf %75, %76 : vector<2x128xf32>
    %cst_25 = arith.constant dense<0.000000e+00> : vector<2x128xf32>
    %78 = tpu.matmul %50, %4, %cst_25 {dimension_numbers = #tpu.dot_dimension_numbers<[1], [0], [0], [1], [0, 0, 1, 1], [], []>} : vector<2x32xf32>, vector<32x128xf32>, vector<2x128xf32> -> vector<2x128xf32>
    %79 = arith.addf %77, %78 : vector<2x128xf32>
    %80 = arith.negf %79 : vector<2x128xf32>
    %81 = math.exp %80 : vector<2x128xf32>
    %cst_26 = arith.constant 1.000000e+00 : f32
    %82 = vector.broadcast %cst_26 : f32 to vector<2x128xf32>
    %83 = arith.addf %82, %81 : vector<2x128xf32>
    %84 = arith.divf %82, %83 : vector<2x128xf32>
    %85 = math.tanh %79 : vector<2x128xf32>
    %86 = vector.extract_strided_slice %84 {offsets = [0, 0], sizes = [2, 32], strides = [1, 1]} : vector<2x128xf32> to vector<2x32xf32>
    %87 = vector.extract_strided_slice %84 {offsets = [0, 32], sizes = [2, 32], strides = [1, 1]} : vector<2x128xf32> to vector<2x32xf32>
    %88 = vector.extract_strided_slice %85 {offsets = [0, 64], sizes = [2, 32], strides = [1, 1]} : vector<2x128xf32> to vector<2x32xf32>
    %89 = vector.extract_strided_slice %84 {offsets = [0, 96], sizes = [2, 32], strides = [1, 1]} : vector<2x128xf32> to vector<2x32xf32>
    %90 = arith.mulf %87, %48 : vector<2x32xf32>
    %91 = arith.mulf %86, %88 : vector<2x32xf32>
    %92 = arith.addf %90, %91 : vector<2x32xf32>
    %93 = math.tanh %92 : vector<2x32xf32>
    %94 = arith.mulf %89, %93 : vector<2x32xf32>
    %95 = vector.broadcast %1 : vector<1x128xf32> to vector<2x128xf32>
    %96 = arith.addf %74, %95 : vector<2x128xf32>
    %97 = vector.extract_strided_slice %70 {offsets = [0, 0], sizes = [2, 128], strides = [1, 1]} : vector<2x256xf32> to vector<2x128xf32>
    %98 = arith.addf %96, %97 : vector<2x128xf32>
    %99 = arith.negf %98 : vector<2x128xf32>
    %100 = math.exp %99 : vector<2x128xf32>
    %cst_27 = arith.constant 1.000000e+00 : f32
    %101 = vector.broadcast %cst_27 : f32 to vector<2x128xf32>
    %102 = arith.addf %101, %100 : vector<2x128xf32>
    %103 = arith.divf %101, %102 : vector<2x128xf32>
    %104 = math.tanh %98 : vector<2x128xf32>
    %105 = vector.extract_strided_slice %103 {offsets = [0, 0], sizes = [2, 32], strides = [1, 1]} : vector<2x128xf32> to vector<2x32xf32>
    %106 = vector.extract_strided_slice %103 {offsets = [0, 32], sizes = [2, 32], strides = [1, 1]} : vector<2x128xf32> to vector<2x32xf32>
    %107 = vector.extract_strided_slice %104 {offsets = [0, 64], sizes = [2, 32], strides = [1, 1]} : vector<2x128xf32> to vector<2x32xf32>
    %108 = vector.extract_strided_slice %103 {offsets = [0, 96], sizes = [2, 32], strides = [1, 1]} : vector<2x128xf32> to vector<2x32xf32>
    %109 = arith.mulf %106, %67 : vector<2x32xf32>
    %110 = arith.mulf %105, %107 : vector<2x32xf32>
    %111 = arith.addf %109, %110 : vector<2x32xf32>
    %112 = math.tanh %111 : vector<2x32xf32>
    %113 = arith.mulf %108, %112 : vector<2x32xf32>
    %c3_i32 = arith.constant 3 : i32
    %cst_28 = arith.constant dense<0.000000e+00> : vector<2x256xf32>
    %114 = tpu.matmul %113, %2, %cst_28 {dimension_numbers = #tpu.dot_dimension_numbers<[1], [0], [0], [1], [0, 0, 1, 1], [], []>} : vector<2x32xf32>, vector<32x256xf32>, vector<2x256xf32> -> vector<2x256xf32>
    %115 = arith.index_cast %c3_i32 : i32 to index
    %c0_29 = arith.constant 0 : index
    %c0_30 = arith.constant 0 : index
    %116 = vector.load %arg0[%115, %c0_29, %c0_30] : memref<8x2x32xf32, #tpu.memory_space<vmem>>, vector<1x2x32xf32>
    %117 = vector.shape_cast %116 : vector<1x2x32xf32> to vector<2x32xf32>
    %cst_31 = arith.constant dense<0.000000e+00> : vector<2x128xf32>
    %118 = tpu.matmul %117, %0, %cst_31 {dimension_numbers = #tpu.dot_dimension_numbers<[1], [0], [0], [1], [0, 0, 1, 1], [], []>} : vector<2x32xf32>, vector<32x128xf32>, vector<2x128xf32> -> vector<2x128xf32>
    %119 = vector.extract_strided_slice %114 {offsets = [0, 128], sizes = [2, 128], strides = [1, 1]} : vector<2x256xf32> to vector<2x128xf32>
    %120 = vector.broadcast %3 : vector<1x128xf32> to vector<2x128xf32>
    %121 = arith.addf %119, %120 : vector<2x128xf32>
    %cst_32 = arith.constant dense<0.000000e+00> : vector<2x128xf32>
    %122 = tpu.matmul %94, %4, %cst_32 {dimension_numbers = #tpu.dot_dimension_numbers<[1], [0], [0], [1], [0, 0, 1, 1], [], []>} : vector<2x32xf32>, vector<32x128xf32>, vector<2x128xf32> -> vector<2x128xf32>
    %123 = arith.addf %121, %122 : vector<2x128xf32>
    %124 = arith.negf %123 : vector<2x128xf32>
    %125 = math.exp %124 : vector<2x128xf32>
    %cst_33 = arith.constant 1.000000e+00 : f32
    %126 = vector.broadcast %cst_33 : f32 to vector<2x128xf32>
    %127 = arith.addf %126, %125 : vector<2x128xf32>
    %128 = arith.divf %126, %127 : vector<2x128xf32>
    %129 = math.tanh %123 : vector<2x128xf32>
    %130 = vector.extract_strided_slice %128 {offsets = [0, 0], sizes = [2, 32], strides = [1, 1]} : vector<2x128xf32> to vector<2x32xf32>
    %131 = vector.extract_strided_slice %128 {offsets = [0, 32], sizes = [2, 32], strides = [1, 1]} : vector<2x128xf32> to vector<2x32xf32>
    %132 = vector.extract_strided_slice %129 {offsets = [0, 64], sizes = [2, 32], strides = [1, 1]} : vector<2x128xf32> to vector<2x32xf32>
    %133 = vector.extract_strided_slice %128 {offsets = [0, 96], sizes = [2, 32], strides = [1, 1]} : vector<2x128xf32> to vector<2x32xf32>
    %134 = arith.mulf %131, %92 : vector<2x32xf32>
    %135 = arith.mulf %130, %132 : vector<2x32xf32>
    %136 = arith.addf %134, %135 : vector<2x32xf32>
    %137 = math.tanh %136 : vector<2x32xf32>
    %138 = arith.mulf %133, %137 : vector<2x32xf32>
    %139 = vector.broadcast %1 : vector<1x128xf32> to vector<2x128xf32>
    %140 = arith.addf %118, %139 : vector<2x128xf32>
    %141 = vector.extract_strided_slice %114 {offsets = [0, 0], sizes = [2, 128], strides = [1, 1]} : vector<2x256xf32> to vector<2x128xf32>
    %142 = arith.addf %140, %141 : vector<2x128xf32>
    %143 = arith.negf %142 : vector<2x128xf32>
    %144 = math.exp %143 : vector<2x128xf32>
    %cst_34 = arith.constant 1.000000e+00 : f32
    %145 = vector.broadcast %cst_34 : f32 to vector<2x128xf32>
    %146 = arith.addf %145, %144 : vector<2x128xf32>
    %147 = arith.divf %145, %146 : vector<2x128xf32>
    %148 = math.tanh %142 : vector<2x128xf32>
    %149 = vector.extract_strided_slice %147 {offsets = [0, 0], sizes = [2, 32], strides = [1, 1]} : vector<2x128xf32> to vector<2x32xf32>
    %150 = vector.extract_strided_slice %147 {offsets = [0, 32], sizes = [2, 32], strides = [1, 1]} : vector<2x128xf32> to vector<2x32xf32>
    %151 = vector.extract_strided_slice %148 {offsets = [0, 64], sizes = [2, 32], strides = [1, 1]} : vector<2x128xf32> to vector<2x32xf32>
    %152 = vector.extract_strided_slice %147 {offsets = [0, 96], sizes = [2, 32], strides = [1, 1]} : vector<2x128xf32> to vector<2x32xf32>
    %153 = arith.mulf %150, %111 : vector<2x32xf32>
    %154 = arith.mulf %149, %151 : vector<2x32xf32>
    %155 = arith.addf %153, %154 : vector<2x32xf32>
    %156 = math.tanh %155 : vector<2x32xf32>
    %157 = arith.mulf %152, %156 : vector<2x32xf32>
    %c4_i32 = arith.constant 4 : i32
    %cst_35 = arith.constant dense<0.000000e+00> : vector<2x256xf32>
    %158 = tpu.matmul %157, %2, %cst_35 {dimension_numbers = #tpu.dot_dimension_numbers<[1], [0], [0], [1], [0, 0, 1, 1], [], []>} : vector<2x32xf32>, vector<32x256xf32>, vector<2x256xf32> -> vector<2x256xf32>
    %159 = arith.index_cast %c4_i32 : i32 to index
    %c0_36 = arith.constant 0 : index
    %c0_37 = arith.constant 0 : index
    %160 = vector.load %arg0[%159, %c0_36, %c0_37] : memref<8x2x32xf32, #tpu.memory_space<vmem>>, vector<1x2x32xf32>
    %161 = vector.shape_cast %160 : vector<1x2x32xf32> to vector<2x32xf32>
    %cst_38 = arith.constant dense<0.000000e+00> : vector<2x128xf32>
    %162 = tpu.matmul %161, %0, %cst_38 {dimension_numbers = #tpu.dot_dimension_numbers<[1], [0], [0], [1], [0, 0, 1, 1], [], []>} : vector<2x32xf32>, vector<32x128xf32>, vector<2x128xf32> -> vector<2x128xf32>
    %163 = vector.extract_strided_slice %158 {offsets = [0, 128], sizes = [2, 128], strides = [1, 1]} : vector<2x256xf32> to vector<2x128xf32>
    %164 = vector.broadcast %3 : vector<1x128xf32> to vector<2x128xf32>
    %165 = arith.addf %163, %164 : vector<2x128xf32>
    %cst_39 = arith.constant dense<0.000000e+00> : vector<2x128xf32>
    %166 = tpu.matmul %138, %4, %cst_39 {dimension_numbers = #tpu.dot_dimension_numbers<[1], [0], [0], [1], [0, 0, 1, 1], [], []>} : vector<2x32xf32>, vector<32x128xf32>, vector<2x128xf32> -> vector<2x128xf32>
    %167 = arith.addf %165, %166 : vector<2x128xf32>
    %168 = arith.negf %167 : vector<2x128xf32>
    %169 = math.exp %168 : vector<2x128xf32>
    %cst_40 = arith.constant 1.000000e+00 : f32
    %170 = vector.broadcast %cst_40 : f32 to vector<2x128xf32>
    %171 = arith.addf %170, %169 : vector<2x128xf32>
    %172 = arith.divf %170, %171 : vector<2x128xf32>
    %173 = math.tanh %167 : vector<2x128xf32>
    %174 = vector.extract_strided_slice %172 {offsets = [0, 0], sizes = [2, 32], strides = [1, 1]} : vector<2x128xf32> to vector<2x32xf32>
    %175 = vector.extract_strided_slice %172 {offsets = [0, 32], sizes = [2, 32], strides = [1, 1]} : vector<2x128xf32> to vector<2x32xf32>
    %176 = vector.extract_strided_slice %173 {offsets = [0, 64], sizes = [2, 32], strides = [1, 1]} : vector<2x128xf32> to vector<2x32xf32>
    %177 = vector.extract_strided_slice %172 {offsets = [0, 96], sizes = [2, 32], strides = [1, 1]} : vector<2x128xf32> to vector<2x32xf32>
    %178 = arith.mulf %175, %136 : vector<2x32xf32>
    %179 = arith.mulf %174, %176 : vector<2x32xf32>
    %180 = arith.addf %178, %179 : vector<2x32xf32>
    %181 = math.tanh %180 : vector<2x32xf32>
    %182 = arith.mulf %177, %181 : vector<2x32xf32>
    %183 = vector.broadcast %1 : vector<1x128xf32> to vector<2x128xf32>
    %184 = arith.addf %162, %183 : vector<2x128xf32>
    %185 = vector.extract_strided_slice %158 {offsets = [0, 0], sizes = [2, 128], strides = [1, 1]} : vector<2x256xf32> to vector<2x128xf32>
    %186 = arith.addf %184, %185 : vector<2x128xf32>
    %187 = arith.negf %186 : vector<2x128xf32>
    %188 = math.exp %187 : vector<2x128xf32>
    %cst_41 = arith.constant 1.000000e+00 : f32
    %189 = vector.broadcast %cst_41 : f32 to vector<2x128xf32>
    %190 = arith.addf %189, %188 : vector<2x128xf32>
    %191 = arith.divf %189, %190 : vector<2x128xf32>
    %192 = math.tanh %186 : vector<2x128xf32>
    %193 = vector.extract_strided_slice %191 {offsets = [0, 0], sizes = [2, 32], strides = [1, 1]} : vector<2x128xf32> to vector<2x32xf32>
    %194 = vector.extract_strided_slice %191 {offsets = [0, 32], sizes = [2, 32], strides = [1, 1]} : vector<2x128xf32> to vector<2x32xf32>
    %195 = vector.extract_strided_slice %192 {offsets = [0, 64], sizes = [2, 32], strides = [1, 1]} : vector<2x128xf32> to vector<2x32xf32>
    %196 = vector.extract_strided_slice %191 {offsets = [0, 96], sizes = [2, 32], strides = [1, 1]} : vector<2x128xf32> to vector<2x32xf32>
    %197 = arith.mulf %194, %155 : vector<2x32xf32>
    %198 = arith.mulf %193, %195 : vector<2x32xf32>
    %199 = arith.addf %197, %198 : vector<2x32xf32>
    %200 = math.tanh %199 : vector<2x32xf32>
    %201 = arith.mulf %196, %200 : vector<2x32xf32>
    %c5_i32 = arith.constant 5 : i32
    %cst_42 = arith.constant dense<0.000000e+00> : vector<2x256xf32>
    %202 = tpu.matmul %201, %2, %cst_42 {dimension_numbers = #tpu.dot_dimension_numbers<[1], [0], [0], [1], [0, 0, 1, 1], [], []>} : vector<2x32xf32>, vector<32x256xf32>, vector<2x256xf32> -> vector<2x256xf32>
    %203 = arith.index_cast %c5_i32 : i32 to index
    %c0_43 = arith.constant 0 : index
    %c0_44 = arith.constant 0 : index
    %204 = vector.load %arg0[%203, %c0_43, %c0_44] : memref<8x2x32xf32, #tpu.memory_space<vmem>>, vector<1x2x32xf32>
    %205 = vector.shape_cast %204 : vector<1x2x32xf32> to vector<2x32xf32>
    %cst_45 = arith.constant dense<0.000000e+00> : vector<2x128xf32>
    %206 = tpu.matmul %205, %0, %cst_45 {dimension_numbers = #tpu.dot_dimension_numbers<[1], [0], [0], [1], [0, 0, 1, 1], [], []>} : vector<2x32xf32>, vector<32x128xf32>, vector<2x128xf32> -> vector<2x128xf32>
    %207 = vector.extract_strided_slice %202 {offsets = [0, 128], sizes = [2, 128], strides = [1, 1]} : vector<2x256xf32> to vector<2x128xf32>
    %208 = vector.broadcast %3 : vector<1x128xf32> to vector<2x128xf32>
    %209 = arith.addf %207, %208 : vector<2x128xf32>
    %cst_46 = arith.constant dense<0.000000e+00> : vector<2x128xf32>
    %210 = tpu.matmul %182, %4, %cst_46 {dimension_numbers = #tpu.dot_dimension_numbers<[1], [0], [0], [1], [0, 0, 1, 1], [], []>} : vector<2x32xf32>, vector<32x128xf32>, vector<2x128xf32> -> vector<2x128xf32>
    %211 = arith.addf %209, %210 : vector<2x128xf32>
    %212 = arith.negf %211 : vector<2x128xf32>
    %213 = math.exp %212 : vector<2x128xf32>
    %cst_47 = arith.constant 1.000000e+00 : f32
    %214 = vector.broadcast %cst_47 : f32 to vector<2x128xf32>
    %215 = arith.addf %214, %213 : vector<2x128xf32>
    %216 = arith.divf %214, %215 : vector<2x128xf32>
    %217 = math.tanh %211 : vector<2x128xf32>
    %218 = vector.extract_strided_slice %216 {offsets = [0, 0], sizes = [2, 32], strides = [1, 1]} : vector<2x128xf32> to vector<2x32xf32>
    %219 = vector.extract_strided_slice %216 {offsets = [0, 32], sizes = [2, 32], strides = [1, 1]} : vector<2x128xf32> to vector<2x32xf32>
    %220 = vector.extract_strided_slice %217 {offsets = [0, 64], sizes = [2, 32], strides = [1, 1]} : vector<2x128xf32> to vector<2x32xf32>
    %221 = vector.extract_strided_slice %216 {offsets = [0, 96], sizes = [2, 32], strides = [1, 1]} : vector<2x128xf32> to vector<2x32xf32>
    %222 = arith.mulf %219, %180 : vector<2x32xf32>
    %223 = arith.mulf %218, %220 : vector<2x32xf32>
    %224 = arith.addf %222, %223 : vector<2x32xf32>
    %225 = math.tanh %224 : vector<2x32xf32>
    %226 = arith.mulf %221, %225 : vector<2x32xf32>
    %227 = vector.broadcast %1 : vector<1x128xf32> to vector<2x128xf32>
    %228 = arith.addf %206, %227 : vector<2x128xf32>
    %229 = vector.extract_strided_slice %202 {offsets = [0, 0], sizes = [2, 128], strides = [1, 1]} : vector<2x256xf32> to vector<2x128xf32>
    %230 = arith.addf %228, %229 : vector<2x128xf32>
    %231 = arith.negf %230 : vector<2x128xf32>
    %232 = math.exp %231 : vector<2x128xf32>
    %cst_48 = arith.constant 1.000000e+00 : f32
    %233 = vector.broadcast %cst_48 : f32 to vector<2x128xf32>
    %234 = arith.addf %233, %232 : vector<2x128xf32>
    %235 = arith.divf %233, %234 : vector<2x128xf32>
    %236 = math.tanh %230 : vector<2x128xf32>
    %237 = vector.extract_strided_slice %235 {offsets = [0, 0], sizes = [2, 32], strides = [1, 1]} : vector<2x128xf32> to vector<2x32xf32>
    %238 = vector.extract_strided_slice %235 {offsets = [0, 32], sizes = [2, 32], strides = [1, 1]} : vector<2x128xf32> to vector<2x32xf32>
    %239 = vector.extract_strided_slice %236 {offsets = [0, 64], sizes = [2, 32], strides = [1, 1]} : vector<2x128xf32> to vector<2x32xf32>
    %240 = vector.extract_strided_slice %235 {offsets = [0, 96], sizes = [2, 32], strides = [1, 1]} : vector<2x128xf32> to vector<2x32xf32>
    %241 = arith.mulf %238, %199 : vector<2x32xf32>
    %242 = arith.mulf %237, %239 : vector<2x32xf32>
    %243 = arith.addf %241, %242 : vector<2x32xf32>
    %244 = math.tanh %243 : vector<2x32xf32>
    %245 = arith.mulf %240, %244 : vector<2x32xf32>
    %c6_i32 = arith.constant 6 : i32
    %cst_49 = arith.constant dense<0.000000e+00> : vector<2x256xf32>
    %246 = tpu.matmul %245, %2, %cst_49 {dimension_numbers = #tpu.dot_dimension_numbers<[1], [0], [0], [1], [0, 0, 1, 1], [], []>} : vector<2x32xf32>, vector<32x256xf32>, vector<2x256xf32> -> vector<2x256xf32>
    %247 = arith.index_cast %c6_i32 : i32 to index
    %c0_50 = arith.constant 0 : index
    %c0_51 = arith.constant 0 : index
    %248 = vector.load %arg0[%247, %c0_50, %c0_51] : memref<8x2x32xf32, #tpu.memory_space<vmem>>, vector<1x2x32xf32>
    %249 = vector.shape_cast %248 : vector<1x2x32xf32> to vector<2x32xf32>
    %cst_52 = arith.constant dense<0.000000e+00> : vector<2x128xf32>
    %250 = tpu.matmul %249, %0, %cst_52 {dimension_numbers = #tpu.dot_dimension_numbers<[1], [0], [0], [1], [0, 0, 1, 1], [], []>} : vector<2x32xf32>, vector<32x128xf32>, vector<2x128xf32> -> vector<2x128xf32>
    %251 = vector.extract_strided_slice %246 {offsets = [0, 128], sizes = [2, 128], strides = [1, 1]} : vector<2x256xf32> to vector<2x128xf32>
    %252 = vector.broadcast %3 : vector<1x128xf32> to vector<2x128xf32>
    %253 = arith.addf %251, %252 : vector<2x128xf32>
    %cst_53 = arith.constant dense<0.000000e+00> : vector<2x128xf32>
    %254 = tpu.matmul %226, %4, %cst_53 {dimension_numbers = #tpu.dot_dimension_numbers<[1], [0], [0], [1], [0, 0, 1, 1], [], []>} : vector<2x32xf32>, vector<32x128xf32>, vector<2x128xf32> -> vector<2x128xf32>
    %255 = arith.addf %253, %254 : vector<2x128xf32>
    %256 = arith.negf %255 : vector<2x128xf32>
    %257 = math.exp %256 : vector<2x128xf32>
    %cst_54 = arith.constant 1.000000e+00 : f32
    %258 = vector.broadcast %cst_54 : f32 to vector<2x128xf32>
    %259 = arith.addf %258, %257 : vector<2x128xf32>
    %260 = arith.divf %258, %259 : vector<2x128xf32>
    %261 = math.tanh %255 : vector<2x128xf32>
    %262 = vector.extract_strided_slice %260 {offsets = [0, 0], sizes = [2, 32], strides = [1, 1]} : vector<2x128xf32> to vector<2x32xf32>
    %263 = vector.extract_strided_slice %260 {offsets = [0, 32], sizes = [2, 32], strides = [1, 1]} : vector<2x128xf32> to vector<2x32xf32>
    %264 = vector.extract_strided_slice %261 {offsets = [0, 64], sizes = [2, 32], strides = [1, 1]} : vector<2x128xf32> to vector<2x32xf32>
    %265 = vector.extract_strided_slice %260 {offsets = [0, 96], sizes = [2, 32], strides = [1, 1]} : vector<2x128xf32> to vector<2x32xf32>
    %266 = arith.mulf %263, %224 : vector<2x32xf32>
    %267 = arith.mulf %262, %264 : vector<2x32xf32>
    %268 = arith.addf %266, %267 : vector<2x32xf32>
    %269 = math.tanh %268 : vector<2x32xf32>
    %270 = arith.mulf %265, %269 : vector<2x32xf32>
    %271 = vector.broadcast %1 : vector<1x128xf32> to vector<2x128xf32>
    %272 = arith.addf %250, %271 : vector<2x128xf32>
    %273 = vector.extract_strided_slice %246 {offsets = [0, 0], sizes = [2, 128], strides = [1, 1]} : vector<2x256xf32> to vector<2x128xf32>
    %274 = arith.addf %272, %273 : vector<2x128xf32>
    %275 = arith.negf %274 : vector<2x128xf32>
    %276 = math.exp %275 : vector<2x128xf32>
    %cst_55 = arith.constant 1.000000e+00 : f32
    %277 = vector.broadcast %cst_55 : f32 to vector<2x128xf32>
    %278 = arith.addf %277, %276 : vector<2x128xf32>
    %279 = arith.divf %277, %278 : vector<2x128xf32>
    %280 = math.tanh %274 : vector<2x128xf32>
    %281 = vector.extract_strided_slice %279 {offsets = [0, 0], sizes = [2, 32], strides = [1, 1]} : vector<2x128xf32> to vector<2x32xf32>
    %282 = vector.extract_strided_slice %279 {offsets = [0, 32], sizes = [2, 32], strides = [1, 1]} : vector<2x128xf32> to vector<2x32xf32>
    %283 = vector.extract_strided_slice %280 {offsets = [0, 64], sizes = [2, 32], strides = [1, 1]} : vector<2x128xf32> to vector<2x32xf32>
    %284 = vector.extract_strided_slice %279 {offsets = [0, 96], sizes = [2, 32], strides = [1, 1]} : vector<2x128xf32> to vector<2x32xf32>
    %285 = arith.mulf %282, %243 : vector<2x32xf32>
    %286 = arith.mulf %281, %283 : vector<2x32xf32>
    %287 = arith.addf %285, %286 : vector<2x32xf32>
    %288 = math.tanh %287 : vector<2x32xf32>
    %289 = arith.mulf %284, %288 : vector<2x32xf32>
    %c7_i32 = arith.constant 7 : i32
    %cst_56 = arith.constant dense<0.000000e+00> : vector<2x256xf32>
    %290 = tpu.matmul %289, %2, %cst_56 {dimension_numbers = #tpu.dot_dimension_numbers<[1], [0], [0], [1], [0, 0, 1, 1], [], []>} : vector<2x32xf32>, vector<32x256xf32>, vector<2x256xf32> -> vector<2x256xf32>
    %291 = arith.index_cast %c7_i32 : i32 to index
    %c0_57 = arith.constant 0 : index
    %c0_58 = arith.constant 0 : index
    %292 = vector.load %arg0[%291, %c0_57, %c0_58] : memref<8x2x32xf32, #tpu.memory_space<vmem>>, vector<1x2x32xf32>
    %293 = vector.shape_cast %292 : vector<1x2x32xf32> to vector<2x32xf32>
    %cst_59 = arith.constant dense<0.000000e+00> : vector<2x128xf32>
    %294 = tpu.matmul %293, %0, %cst_59 {dimension_numbers = #tpu.dot_dimension_numbers<[1], [0], [0], [1], [0, 0, 1, 1], [], []>} : vector<2x32xf32>, vector<32x128xf32>, vector<2x128xf32> -> vector<2x128xf32>
    %295 = vector.extract_strided_slice %290 {offsets = [0, 128], sizes = [2, 128], strides = [1, 1]} : vector<2x256xf32> to vector<2x128xf32>
    %296 = vector.broadcast %3 : vector<1x128xf32> to vector<2x128xf32>
    %297 = arith.addf %295, %296 : vector<2x128xf32>
    %cst_60 = arith.constant dense<0.000000e+00> : vector<2x128xf32>
    %298 = tpu.matmul %270, %4, %cst_60 {dimension_numbers = #tpu.dot_dimension_numbers<[1], [0], [0], [1], [0, 0, 1, 1], [], []>} : vector<2x32xf32>, vector<32x128xf32>, vector<2x128xf32> -> vector<2x128xf32>
    %299 = arith.addf %297, %298 : vector<2x128xf32>
    %300 = arith.negf %299 : vector<2x128xf32>
    %301 = math.exp %300 : vector<2x128xf32>
    %cst_61 = arith.constant 1.000000e+00 : f32
    %302 = vector.broadcast %cst_61 : f32 to vector<2x128xf32>
    %303 = arith.addf %302, %301 : vector<2x128xf32>
    %304 = arith.divf %302, %303 : vector<2x128xf32>
    %305 = math.tanh %299 : vector<2x128xf32>
    %306 = vector.extract_strided_slice %304 {offsets = [0, 0], sizes = [2, 32], strides = [1, 1]} : vector<2x128xf32> to vector<2x32xf32>
    %307 = vector.extract_strided_slice %304 {offsets = [0, 32], sizes = [2, 32], strides = [1, 1]} : vector<2x128xf32> to vector<2x32xf32>
    %308 = vector.extract_strided_slice %305 {offsets = [0, 64], sizes = [2, 32], strides = [1, 1]} : vector<2x128xf32> to vector<2x32xf32>
    %309 = vector.extract_strided_slice %304 {offsets = [0, 96], sizes = [2, 32], strides = [1, 1]} : vector<2x128xf32> to vector<2x32xf32>
    %310 = arith.mulf %307, %268 : vector<2x32xf32>
    %311 = arith.mulf %306, %308 : vector<2x32xf32>
    %312 = arith.addf %310, %311 : vector<2x32xf32>
    %313 = math.tanh %312 : vector<2x32xf32>
    %314 = arith.mulf %309, %313 : vector<2x32xf32>
    %315 = vector.broadcast %1 : vector<1x128xf32> to vector<2x128xf32>
    %316 = arith.addf %294, %315 : vector<2x128xf32>
    %317 = vector.extract_strided_slice %290 {offsets = [0, 0], sizes = [2, 128], strides = [1, 1]} : vector<2x256xf32> to vector<2x128xf32>
    %318 = arith.addf %316, %317 : vector<2x128xf32>
    %319 = arith.negf %318 : vector<2x128xf32>
    %320 = math.exp %319 : vector<2x128xf32>
    %cst_62 = arith.constant 1.000000e+00 : f32
    %321 = vector.broadcast %cst_62 : f32 to vector<2x128xf32>
    %322 = arith.addf %321, %320 : vector<2x128xf32>
    %323 = arith.divf %321, %322 : vector<2x128xf32>
    %324 = math.tanh %318 : vector<2x128xf32>
    %325 = vector.extract_strided_slice %323 {offsets = [0, 0], sizes = [2, 32], strides = [1, 1]} : vector<2x128xf32> to vector<2x32xf32>
    %326 = vector.extract_strided_slice %323 {offsets = [0, 32], sizes = [2, 32], strides = [1, 1]} : vector<2x128xf32> to vector<2x32xf32>
    %327 = vector.extract_strided_slice %324 {offsets = [0, 64], sizes = [2, 32], strides = [1, 1]} : vector<2x128xf32> to vector<2x32xf32>
    %328 = vector.extract_strided_slice %323 {offsets = [0, 96], sizes = [2, 32], strides = [1, 1]} : vector<2x128xf32> to vector<2x32xf32>
    %329 = arith.mulf %326, %287 : vector<2x32xf32>
    %330 = arith.mulf %325, %327 : vector<2x32xf32>
    %331 = arith.addf %329, %330 : vector<2x32xf32>
    %332 = math.tanh %331 : vector<2x32xf32>
    %333 = arith.mulf %328, %332 : vector<2x32xf32>
    %c7_i32_63 = arith.constant 7 : i32
    %cst_64 = arith.constant dense<0.000000e+00> : vector<2x256xf32>
    %334 = tpu.matmul %333, %2, %cst_64 {dimension_numbers = #tpu.dot_dimension_numbers<[1], [0], [0], [1], [0, 0, 1, 1], [], []>} : vector<2x32xf32>, vector<32x256xf32>, vector<2x256xf32> -> vector<2x256xf32>
    %335 = vector.extract_strided_slice %334 {offsets = [0, 128], sizes = [2, 128], strides = [1, 1]} : vector<2x256xf32> to vector<2x128xf32>
    %336 = vector.broadcast %3 : vector<1x128xf32> to vector<2x128xf32>
    %337 = arith.addf %335, %336 : vector<2x128xf32>
    %cst_65 = arith.constant dense<0.000000e+00> : vector<2x128xf32>
    %338 = tpu.matmul %314, %4, %cst_65 {dimension_numbers = #tpu.dot_dimension_numbers<[1], [0], [0], [1], [0, 0, 1, 1], [], []>} : vector<2x32xf32>, vector<32x128xf32>, vector<2x128xf32> -> vector<2x128xf32>
    %339 = arith.addf %337, %338 : vector<2x128xf32>
    %340 = arith.negf %339 : vector<2x128xf32>
    %341 = math.exp %340 : vector<2x128xf32>
    %cst_66 = arith.constant 1.000000e+00 : f32
    %342 = vector.broadcast %cst_66 : f32 to vector<2x128xf32>
    %343 = arith.addf %342, %341 : vector<2x128xf32>
    %344 = arith.divf %342, %343 : vector<2x128xf32>
    %345 = math.tanh %339 : vector<2x128xf32>
    %346 = vector.extract_strided_slice %344 {offsets = [0, 0], sizes = [2, 32], strides = [1, 1]} : vector<2x128xf32> to vector<2x32xf32>
    %347 = vector.extract_strided_slice %344 {offsets = [0, 32], sizes = [2, 32], strides = [1, 1]} : vector<2x128xf32> to vector<2x32xf32>
    %348 = vector.extract_strided_slice %345 {offsets = [0, 64], sizes = [2, 32], strides = [1, 1]} : vector<2x128xf32> to vector<2x32xf32>
    %349 = vector.extract_strided_slice %344 {offsets = [0, 96], sizes = [2, 32], strides = [1, 1]} : vector<2x128xf32> to vector<2x32xf32>
    %350 = arith.mulf %347, %312 : vector<2x32xf32>
    %351 = arith.mulf %346, %348 : vector<2x32xf32>
    %352 = arith.addf %350, %351 : vector<2x32xf32>
    %353 = math.tanh %352 : vector<2x32xf32>
    %354 = arith.mulf %349, %353 : vector<2x32xf32>
    %c0_67 = arith.constant 0 : index
    %c0_68 = arith.constant 0 : index
    %355 = vector.load %arg6[%c0_67, %c0_68] : memref<32x10xf32, #tpu.memory_space<vmem>>, vector<32x10xf32>
    %cst_69 = arith.constant dense<0.000000e+00> : vector<2x10xf32>
    %356 = tpu.matmul %354, %355, %cst_69 {dimension_numbers = #tpu.dot_dimension_numbers<[1], [0], [0], [1], [0, 0, 1, 1], [], []>} : vector<2x32xf32>, vector<32x10xf32>, vector<2x10xf32> -> vector<2x10xf32>
    %c0_70 = arith.constant 0 : index
    %c0_71 = arith.constant 0 : index
    %357 = vector.load %arg7[%c0_70, %c0_71] : memref<1x10xf32, #tpu.memory_space<vmem>>, vector<1x10xf32>
    %358 = vector.broadcast %357 : vector<1x10xf32> to vector<2x10xf32>
    %359 = arith.addf %356, %358 : vector<2x10xf32>
    %c0_72 = arith.constant 0 : index
    %c0_73 = arith.constant 0 : index
    %360 = vector.load %arg8[%c0_72, %c0_73] : memref<2x10xf32, #tpu.memory_space<vmem>>, vector<2x10xf32>
    tpu.vector_store %arg8[%c0_72, %c0_73], %359 {strides = array<i32>} : memref<2x10xf32, #tpu.memory_space<vmem>>, vector<2x10xf32>,
    return
  }
}

</mosaic_0001>

<llo_original>
// kernel: _fused_forward.1
$region0: #{_fused_forward.1}
  #allocation0 [shape = 'u32[]', space=smem, size = 0x4, offset = 0x4, fixed_abs, tag = 'smem constant byte address 0x4 - core index']
  #allocation1 [shape = 'u32[144,128]{1,0:T(1,128)}', space=vmem, size = 0x12000, scoped, tag = 'internal scratch']
  %s0 = inlined_call_operand.vmem [shape: f32[8,2,32], index: 0, kind: input, shape index: {}]
  %s1 = inlined_call_operand.vmem [shape: f32[32,128], index: 1, kind: input, shape index: {}]
  %s2 = inlined_call_operand.vmem [shape: f32[1,128], index: 2, kind: input, shape index: {}]
  %s3 = inlined_call_operand.vmem [shape: f32[32,256], index: 3, kind: input, shape index: {}]
  %s4 = inlined_call_operand.vmem [shape: f32[1,128], index: 4, kind: input, shape index: {}]
  %s5 = inlined_call_operand.vmem [shape: f32[32,128], index: 5, kind: input, shape index: {}]
  %s6 = inlined_call_operand.vmem [shape: f32[32,10], index: 6, kind: input, shape index: {}]
  %s7 = inlined_call_operand.vmem [shape: f32[1,10], index: 7, kind: input, shape index: {}]
  %s8 = inlined_call_operand.hbm [shape: f32[2,10], index: 8, kind: output, shape index: {}]
  %s9 = sld [smem:[#allocation0]]
  $region42: #{_fused_forward.1} parent=0
    _
  %s11 = ssub.s32 1, %s9
  %s12 = scalar_select 0, %s11, %s9
  $region1: #{_fused_forward.1} parent=0
    #allocation2 [shape = 'u8[1024]{0}', space=vmem, size = 0x400, scoped, tag = 'output window, operand 0, single buffered']
    #allocation3 [shape = 's32[1]{0}', space=sflag, size = 0x4, scoped, tag = 'scoped memory for _fused_forward.1']
    %13 = vsyncpa [#allocation3], 0
    // Predicated region
    $region2: #{_fused_forward.1} parent=1 // pred_check
      _
    $region3: #{_fused_forward.1} parent=1 // pred_check_branch
      %15 = sbr.rel (0) target = $region5
    $region4: #{_fused_forward.1} parent=1 // pred_region
      _
    $region5: #{_fused_forward.1} parent=1 // pred_fallthru
      _
    // Predicated region
    $region6: #{_fused_forward.1} parent=1 // pred_check
      _
    $region7: #{_fused_forward.1} parent=1 // pred_check_branch
      %17 = sbr.rel (0) target = $region9
    $region8: #{_fused_forward.1} parent=1 // pred_region
      _
    $region9: #{_fused_forward.1} parent=1 // pred_fallthru
      _
    // Predicated region
    $region10: #{_fused_forward.1} parent=1 // pred_check
      _
    $region11: #{_fused_forward.1} parent=1 // pred_check_branch
      %19 = sbr.rel (0) target = $region13
    $region12: #{_fused_forward.1} parent=1 // pred_region
      _
    $region13: #{_fused_forward.1} parent=1 // pred_fallthru
      _
    // Predicated region
    $region14: #{_fused_forward.1} parent=1 // pred_check
      _
    $region15: #{_fused_forward.1} parent=1 // pred_check_branch
      %21 = sbr.rel (0) target = $region17
    $region16: #{_fused_forward.1} parent=1 // pred_region
      _
    $region17: #{_fused_forward.1} parent=1 // pred_fallthru
      _
    // Predicated region
    $region18: #{_fused_forward.1} parent=1 // pred_check
      _
    $region19: #{_fused_forward.1} parent=1 // pred_check_branch
      %23 = sbr.rel (0) target = $region21
    $region20: #{_fused_forward.1} parent=1 // pred_region
      _
    $region21: #{_fused_forward.1} parent=1 // pred_fallthru
      _
    // Predicated region
    $region22: #{_fused_forward.1} parent=1 // pred_check
      _
    $region23: #{_fused_forward.1} parent=1 // pred_check_branch
      %25 = sbr.rel (0) target = $region25
    $region24: #{_fused_forward.1} parent=1 // pred_region
      _
    $region25: #{_fused_forward.1} parent=1 // pred_fallthru
      _
    // Predicated region
    $region26: #{_fused_forward.1} parent=1 // pred_check
      _
    $region27: #{_fused_forward.1} parent=1 // pred_check_branch
      %27 = sbr.rel (0) target = $region29
    $region28: #{_fused_forward.1} parent=1 // pred_region
      _
    $region29: #{_fused_forward.1} parent=1 // pred_fallthru
      _
    // Predicated region
    $region30: #{_fused_forward.1} parent=1 // pred_check
      _
    $region31: #{_fused_forward.1} parent=1 // pred_check_branch
      %29 = sbr.rel (0) target = $region33
    $region32: #{_fused_forward.1} parent=1 // pred_region
      _
    $region33: #{_fused_forward.1} parent=1 // pred_fallthru
      _
    %v30 = vld [vmem:[%s1] sm:$0xff]
    %v31 = vld [vmem:[%s1 + $0x8] sm:$0xff]
    %v32 = vld [vmem:[%s1 + $0x10] sm:$0xff]
    %v33 = vld [vmem:[%s1 + $0x18] sm:$0xff]
    %v34 = vld [vmem:[%s2] sm:$0x1]
    %v35 = vld [vmem:[%s3] sm:$0xff]
    %v36 = vld [vmem:[%s3 + $0x8] sm:$0xff]
    %v37 = vld [vmem:[%s3 + $0x10] sm:$0xff]
    %v38 = vld [vmem:[%s3 + $0x18] sm:$0xff]
    %v39 = vld [vmem:[%s3 + $0x20] sm:$0xff]
    %v40 = vld [vmem:[%s3 + $0x28] sm:$0xff]
    %v41 = vld [vmem:[%s3 + $0x30] sm:$0xff]
    %v42 = vld [vmem:[%s3 + $0x38] sm:$0xff]
    %v43 = vld [vmem:[%s4] sm:$0x1]
    %v44 = vld [vmem:[%s5] sm:$0xff]
    %v45 = vld [vmem:[%s5 + $0x8] sm:$0xff]
    %v46 = vld [vmem:[%s5 + $0x10] sm:$0xff]
    %v47 = vld [vmem:[%s5 + $0x18] sm:$0xff]
    %v48 = vld [vmem:[%s0] sm:$0x3]
    %v50 = vlaneseq
    %v51 = vshrl.u32 %v50, 7
    %v52 = vsub.s32 0, %v51
    %v53 = vrot.slane %v34, %v52
    %vm55 = vcmask 261120
    %v57 = vsel %vm55, %v48, 0
    %59 = vmatprep.subr.mxu0 0.0
    %60 = vmatpush1.msra.mxu0 0.0
    %61 = vmatprep.subr.mxu0 0.0
    %62 = vmatpush1.msra.mxu0 0.0
    %63 = vmatprep.subr.mxu0 0.0
    %64 = vmatpush1.msra.mxu0 0.0
    %65 = vmatprep.subr.mxu0 0.0
    %66 = vmatpush1.msra.mxu0 0.0
    %67 = vmatprep.subr.mxu0 0.0
    %68 = vmatpush1.msra.mxu0 0.0
    %69 = vmatprep.subr.mxu0 0.0
    %70 = vmatpush1.msra.mxu0 0.0
    %71 = vmatprep.subr.mxu0 0.0
    %72 = vmatpush1.msra.mxu0 0.0
    %73 = vmatprep.subr.mxu0 0.0
    %74 = vmatpush1.msra.mxu0 0.0
    %75 = vmatprep.subr.mxu0 0.0
    %76 = vmatpush1.msra.mxu0 0.0
    %77 = vmatprep.subr.mxu0 0.0
    %78 = vmatpush1.msra.mxu0 0.0
    %79 = vmatprep.subr.mxu0 0.0
    %80 = vmatpush1.msra.mxu0 0.0
    %81 = vmatprep.subr.mxu0 0.0
    %82 = vmatpush1.msra.mxu0 0.0
    %83 = vmatprep.subr.mxu0 0.0
    %84 = vmatpush1.msra.mxu0 %v33
    %85 = vmatprep.subr.mxu0 0.0
    %86 = vmatpush1.msra.mxu0 %v32
    %87 = vmatprep.subr.mxu0 0.0
    %88 = vmatpush1.msra.mxu0 %v31
    %89 = vmatprep.subr.mxu0 0.0
    %90 = vmatpush1.msra.mxu0 %v30
    %91 = vmatprep.subr.mxu0 0.0
    %92 = vmatpush2.msra.mxu0 0.0
    %93 = vmatprep.subr.mxu0 0.0
    %94 = vmatpush2.msra.mxu0 0.0
    %95 = vmatprep.subr.mxu0 0.0
    %96 = vmatpush2.msra.mxu0 0.0
    %97 = vmatprep.subr.mxu0 0.0
    %98 = vmatpush2.msra.mxu0 0.0
    %99 = vmatprep.subr.mxu0 0.0
    %100 = vmatpush2.msra.mxu0 0.0
    %101 = vmatprep.subr.mxu0 0.0
    %102 = vmatpush2.msra.mxu0 0.0
    %103 = vmatprep.subr.mxu0 0.0
    %104 = vmatpush2.msra.mxu0 0.0
    %105 = vmatprep.subr.mxu0 0.0
    %106 = vmatpush2.msra.mxu0 0.0
    %107 = vmatprep.subr.mxu0 0.0
    %108 = vmatpush2.msra.mxu0 0.0
    %109 = vmatprep.subr.mxu0 0.0
    %110 = vmatpush2.msra.mxu0 0.0
    %111 = vmatprep.subr.mxu0 0.0
    %112 = vmatpush2.msra.mxu0 0.0
    %113 = vmatprep.subr.mxu0 0.0
    %114 = vmatpush2.msra.mxu0 0.0
    %115 = vmatprep.subr.mxu0 0.0
    %116 = vmatpush2.msra.mxu0 0.0
    %117 = vmatprep.subr.mxu0 0.0
    %118 = vmatpush2.msra.mxu0 0.0
    %119 = vmatprep.subr.mxu0 0.0
    %120 = vmatpush2.msra.mxu0 0.0
    %121 = vmatprep.subr.mxu0 0.0
    %122 = vmatpush2.msra.mxu0 0.0
    %123 = vmatprep.mubr.f32.mxu0 0.0
    %124 = vmatmul.mubr.f32.gmra.mxu0 %v57
    %v125 = vpop.f32.mrf.mxu0
    %v126 = vadd.f32 %v53, %v125
    %v127 = vpop.f32.mrf.mxu0
    %128 = vdwg.mxu0
    %v129 = vxor.u32 %v126, 2147483648
    %v130 = vmul.f32 %v129, 1.442695
    %v131 = vpow.pop %v130
    %v132 = vadd.f32 %v131, 1.0
    %v133 = vrcp.pop %v132
    %v134 = vmul.f32 1.0, %v133
    %v135 = vtanh.pop %v126
    %v136 = vmul.f32 %v134, 0.0
    %138 = vrot.lane.b32.xlu0 %v135, 64
    %v139 = vpop.permute.xlu0 %138
    %v141 = vmul.f32 %v134, %v139
    %143 = vrot.lane.b32.xlu0 %v141, 32
    %v144 = vpop.permute.xlu0 %143
    %v146 = vadd.f32 %v136, %v144
    %v147 = vtanh.pop %v146
    %149 = vrot.lane.b32.xlu0 %v147, 64
    %v150 = vpop.permute.xlu0 %149
    %v152 = vmul.f32 %v134, %v150
    %154 = vrot.lane.b32.xlu0 %v152, 32
    %v155 = vpop.permute.xlu0 %154
    %v156 = vsel %vm55, %v155, 0
    %158 = vmatprep.subr.mxu0 0.0
    %159 = vmatpush1.msra.mxu0 0.0
    %160 = vmatprep.subr.mxu0 0.0
    %161 = vmatpush1.msra.mxu0 0.0
    %162 = vmatprep.subr.mxu0 0.0
    %163 = vmatpush1.msra.mxu0 0.0
    %164 = vmatprep.subr.mxu0 0.0
    %165 = vmatpush1.msra.mxu0 0.0
    %166 = vmatprep.subr.mxu0 0.0
    %167 = vmatpush1.msra.mxu0 0.0
    %168 = vmatprep.subr.mxu0 0.0
    %169 = vmatpush1.msra.mxu0 0.0
    %170 = vmatprep.subr.mxu0 0.0
    %171 = vmatpush1.msra.mxu0 0.0
    %172 = vmatprep.subr.mxu0 0.0
    %173 = vmatpush1.msra.mxu0 0.0
    %174 = vmatprep.subr.mxu0 0.0
    %175 = vmatpush1.msra.mxu0 0.0
    %176 = vmatprep.subr.mxu0 0.0
    %177 = vmatpush1.msra.mxu0 0.0
    %178 = vmatprep.subr.mxu0 0.0
    %179 = vmatpush1.msra.mxu0 0.0
    %180 = vmatprep.subr.mxu0 0.0
    %181 = vmatpush1.msra.mxu0 0.0
    %182 = vmatprep.subr.mxu0 %v42
    %183 = vmatpush1.msra.mxu0 %v41
    %184 = vmatprep.subr.mxu0 %v40
    %185 = vmatpush1.msra.mxu0 %v39
    %186 = vmatprep.subr.mxu0 %v38
    %187 = vmatpush1.msra.mxu0 %v37
    %188 = vmatprep.subr.mxu0 %v36
    %189 = vmatpush1.msra.mxu0 %v35
    %190 = vmatprep.subr.mxu0 0.0
    %191 = vmatpush2.msra.mxu0 0.0
    %192 = vmatprep.subr.mxu0 0.0
    %193 = vmatpush2.msra.mxu0 0.0
    %194 = vmatprep.subr.mxu0 0.0
    %195 = vmatpush2.msra.mxu0 0.0
    %196 = vmatprep.subr.mxu0 0.0
    %197 = vmatpush2.msra.mxu0 0.0
    %198 = vmatprep.subr.mxu0 0.0
    %199 = vmatpush2.msra.mxu0 0.0
    %200 = vmatprep.subr.mxu0 0.0
    %201 = vmatpush2.msra.mxu0 0.0
    %202 = vmatprep.subr.mxu0 0.0
    %203 = vmatpush2.msra.mxu0 0.0
    %204 = vmatprep.subr.mxu0 0.0
    %205 = vmatpush2.msra.mxu0 0.0
    %206 = vmatprep.subr.mxu0 0.0
    %207 = vmatpush2.msra.mxu0 0.0
    %208 = vmatprep.subr.mxu0 0.0
    %209 = vmatpush2.msra.mxu0 0.0
    %210 = vmatprep.subr.mxu0 0.0
    %211 = vmatpush2.msra.mxu0 0.0
    %212 = vmatprep.subr.mxu0 0.0
    %213 = vmatpush2.msra.mxu0 0.0
    %214 = vmatprep.subr.mxu0 0.0
    %215 = vmatpush2.msra.mxu0 0.0
    %216 = vmatprep.subr.mxu0 0.0
    %217 = vmatpush2.msra.mxu0 0.0
    %218 = vmatprep.subr.mxu0 0.0
    %219 = vmatpush2.msra.mxu0 0.0
    %220 = vmatprep.subr.mxu0 0.0
    %221 = vmatpush2.msra.mxu0 0.0
    %222 = vmatprep.mubr.f32.mxu0 0.0
    %223 = vmatmul.mubr.f32.gmra.mxu0 %v156
    %v224 = vpop.f32.mrf.mxu0
    %v225 = vadd.f32 0.0, %v224
    %v226 = vpop.f32.mrf.mxu0
    %v227 = vadd.f32 0.0, %v226
    %228 = vdwg.mxu0
    %s229 = scalar_lea.vmem %s0, 2
    %v230 = vld [vmem:[%s229] sm:$0x3]
    %v232 = vlaneseq
    %v233 = vshrl.u32 %v232, 7
    %v234 = vsub.s32 0, %v233
    %v235 = vrot.slane %v43, %v234
    %v237 = vadd.f32 %v227, %v235
    %v239 = vsel %vm55, 0.0, 0
    %241 = vmatprep.subr.mxu0 0.0
    %242 = vmatpush1.msra.mxu0 0.0
    %243 = vmatprep.subr.mxu0 0.0
    %244 = vmatpush1.msra.mxu0 0.0
    %245 = vmatprep.subr.mxu0 0.0
    %246 = vmatpush1.msra.mxu0 0.0
    %247 = vmatprep.subr.mxu0 0.0
    %248 = vmatpush1.msra.mxu0 0.0
    %249 = vmatprep.subr.mxu0 0.0
    %250 = vmatpush1.msra.mxu0 0.0
    %251 = vmatprep.subr.mxu0 0.0
    %252 = vmatpush1.msra.mxu0 0.0
    %253 = vmatprep.subr.mxu0 0.0
    %254 = vmatpush1.msra.mxu0 0.0
    %255 = vmatprep.subr.mxu0 0.0
    %256 = vmatpush1.msra.mxu0 0.0
    %257 = vmatprep.subr.mxu0 0.0
    %258 = vmatpush1.msra.mxu0 0.0
    %259 = vmatprep.subr.mxu0 0.0
    %260 = vmatpush1.msra.mxu0 0.0
    %261 = vmatprep.subr.mxu0 0.0
    %262 = vmatpush1.msra.mxu0 0.0
    %263 = vmatprep.subr.mxu0 0.0
    %264 = vmatpush1.msra.mxu0 0.0
    %265 = vmatprep.subr.mxu0 0.0
    %266 = vmatpush1.msra.mxu0 %v47
    %267 = vmatprep.subr.mxu0 0.0
    %268 = vmatpush1.msra.mxu0 %v46
    %269 = vmatprep.subr.mxu0 0.0
    %270 = vmatpush1.msra.mxu0 %v45
    %271 = vmatprep.subr.mxu0 0.0
    %272 = vmatpush1.msra.mxu0 %v44
    %273 = vmatprep.subr.mxu0 0.0
    %274 = vmatpush2.msra.mxu0 0.0
    %275 = vmatprep.subr.mxu0 0.0
    %276 = vmatpush2.msra.mxu0 0.0
    %277 = vmatprep.subr.mxu0 0.0
    %278 = vmatpush2.msra.mxu0 0.0
    %279 = vmatprep.subr.mxu0 0.0
    %280 = vmatpush2.msra.mxu0 0.0
    %281 = vmatprep.subr.mxu0 0.0
    %282 = vmatpush2.msra.mxu0 0.0
    %283 = vmatprep.subr.mxu0 0.0
    %284 = vmatpush2.msra.mxu0 0.0
    %285 = vmatprep.subr.mxu0 0.0
    %286 = vmatpush2.msra.mxu0 0.0
    %287 = vmatprep.subr.mxu0 0.0
    %288 = vmatpush2.msra.mxu0 0.0
    %289 = vmatprep.subr.mxu0 0.0
    %290 = vmatpush2.msra.mxu0 0.0
    %291 = vmatprep.subr.mxu0 0.0
    %292 = vmatpush2.msra.mxu0 0.0
    %293 = vmatprep.subr.mxu0 0.0
    %294 = vmatpush2.msra.mxu0 0.0
    %295 = vmatprep.subr.mxu0 0.0
    %296 = vmatpush2.msra.mxu0 0.0
    %297 = vmatprep.subr.mxu0 0.0
    %298 = vmatpush2.msra.mxu0 0.0
    %299 = vmatprep.subr.mxu0 0.0
    %300 = vmatpush2.msra.mxu0 0.0
    %301 = vmatprep.subr.mxu0 0.0
    %302 = vmatpush2.msra.mxu0 0.0
    %303 = vmatprep.subr.mxu0 0.0
    %304 = vmatpush2.msra.mxu0 0.0
    %305 = vmatprep.mubr.f32.mxu0 0.0
    %306 = vmatmul.mubr.f32.gmra.mxu0 %v239
    %v307 = vpop.f32.mrf.mxu0
    %v308 = vadd.f32 0.0, %v307
    %v309 = vpop.f32.mrf.mxu0
    %310 = vdwg.mxu0
    %v311 = vadd.f32 %v237, %v308
    %v312 = vxor.u32 %v311, 2147483648
    %v313 = vmul.f32 %v312, 1.442695
    %v314 = vpow.pop %v313
    %v315 = vadd.f32 %v314, 1.0
    %v316 = vrcp.pop %v315
    %v317 = vmul.f32 1.0, %v316
    %v318 = vtanh.pop %v311
    %v319 = vmul.f32 %v317, 0.0
    %321 = vrot.lane.b32.xlu0 %v318, 64
    %v322 = vpop.permute.xlu0 %321
    %v324 = vmul.f32 %v317, %v322
    %326 = vrot.lane.b32.xlu0 %v324, 32
    %v327 = vpop.permute.xlu0 %326
    %v329 = vadd.f32 %v319, %v327
    %v330 = vtanh.pop %v329
    %332 = vrot.lane.b32.xlu0 %v330, 64
    %v333 = vpop.permute.xlu0 %332
    %v335 = vmul.f32 %v317, %v333
    %v337 = vsel %vm55, %v230, 0
    %339 = vmatprep.subr.mxu0 0.0
    %340 = vmatpush1.msra.mxu0 0.0
    %341 = vmatprep.subr.mxu0 0.0
    %342 = vmatpush1.msra.mxu0 0.0
    %343 = vmatprep.subr.mxu0 0.0
    %344 = vmatpush1.msra.mxu0 0.0
    %345 = vmatprep.subr.mxu0 0.0
    %346 = vmatpush1.msra.mxu0 0.0
    %347 = vmatprep.subr.mxu0 0.0
    %348 = vmatpush1.msra.mxu0 0.0
    %349 = vmatprep.subr.mxu0 0.0
    %350 = vmatpush1.msra.mxu0 0.0
    %351 = vmatprep.subr.mxu0 0.0
    %352 = vmatpush1.msra.mxu0 0.0
    %353 = vmatprep.subr.mxu0 0.0
    %354 = vmatpush1.msra.mxu0 0.0
    %355 = vmatprep.subr.mxu0 0.0
    %356 = vmatpush1.msra.mxu0 0.0
    %357 = vmatprep.subr.mxu0 0.0
    %358 = vmatpush1.msra.mxu0 0.0
    %359 = vmatprep.subr.mxu0 0.0
    %360 = vmatpush1.msra.mxu0 0.0
    %361 = vmatprep.subr.mxu0 0.0
    %362 = vmatpush1.msra.mxu0 0.0
    %363 = vmatprep.subr.mxu0 0.0
    %364 = vmatpush1.msra.mxu0 %v33
    %365 = vmatprep.subr.mxu0 0.0
    %366 = vmatpush1.msra.mxu0 %v32
    %367 = vmatprep.subr.mxu0 0.0
    %368 = vmatpush1.msra.mxu0 %v31
    %369 = vmatprep.subr.mxu0 0.0
    %370 = vmatpush1.msra.mxu0 %v30
    %371 = vmatprep.subr.mxu0 0.0
    %372 = vmatpush2.msra.mxu0 0.0
    %373 = vmatprep.subr.mxu0 0.0
    %374 = vmatpush2.msra.mxu0 0.0
    %375 = vmatprep.subr.mxu0 0.0
    %376 = vmatpush2.msra.mxu0 0.0
    %377 = vmatprep.subr.mxu0 0.0
    %378 = vmatpush2.msra.mxu0 0.0
    %379 = vmatprep.subr.mxu0 0.0
    %380 = vmatpush2.msra.mxu0 0.0
    %381 = vmatprep.subr.mxu0 0.0
    %382 = vmatpush2.msra.mxu0 0.0
    %383 = vmatprep.subr.mxu0 0.0
    %384 = vmatpush2.msra.mxu0 0.0
    %385 = vmatprep.subr.mxu0 0.0
    %386 = vmatpush2.msra.mxu0 0.0
    %387 = vmatprep.subr.mxu0 0.0
    %388 = vmatpush2.msra.mxu0 0.0
    %389 = vmatprep.subr.mxu0 0.0
    %390 = vmatpush2.msra.mxu0 0.0
    %391 = vmatprep.subr.mxu0 0.0
    %392 = vmatpush2.msra.mxu0 0.0
    %393 = vmatprep.subr.mxu0 0.0
    %394 = vmatpush2.msra.mxu0 0.0
    %395 = vmatprep.subr.mxu0 0.0
    %396 = vmatpush2.msra.mxu0 0.0
    %397 = vmatprep.subr.mxu0 0.0
    %398 = vmatpush2.msra.mxu0 0.0
    %399 = vmatprep.subr.mxu0 0.0
    %400 = vmatpush2.msra.mxu0 0.0
    %401 = vmatprep.subr.mxu0 0.0
    %402 = vmatpush2.msra.mxu0 0.0
    %403 = vmatprep.mubr.f32.mxu0 0.0
    %404 = vmatmul.mubr.f32.gmra.mxu0 %v337
    %v405 = vpop.f32.mrf.mxu0
    %v406 = vadd.f32 %v53, %v405
    %v407 = vpop.f32.mrf.mxu0
    %408 = vdwg.mxu0
    %v409 = vadd.f32 %v406, %v225
    %v410 = vxor.u32 %v409, 2147483648
    %v411 = vmul.f32 %v410, 1.442695
    %v412 = vpow.pop %v411
    %v413 = vadd.f32 %v412, 1.0
    %v414 = vrcp.pop %v413
    %v415 = vmul.f32 1.0, %v414
    %v416 = vtanh.pop %v409
    %v417 = vmul.f32 %v415, %v146
    %419 = vrot.lane.b32.xlu0 %v416, 64
    %v420 = vpop.permute.xlu0 %419
    %v422 = vmul.f32 %v415, %v420
    %424 = vrot.lane.b32.xlu0 %v422, 32
    %v425 = vpop.permute.xlu0 %424
    %v427 = vadd.f32 %v417, %v425
    %v428 = vtanh.pop %v427
    %430 = vrot.lane.b32.xlu0 %v428, 64
    %v431 = vpop.permute.xlu0 %430
    %v433 = vmul.f32 %v415, %v431
    %435 = vrot.lane.b32.xlu0 %v433, 32
    %v436 = vpop.permute.xlu0 %435
    %v437 = vsel %vm55, %v436, 0
    %439 = vmatprep.subr.mxu0 0.0
    %440 = vmatpush1.msra.mxu0 0.0
    %441 = vmatprep.subr.mxu0 0.0
    %442 = vmatpush1.msra.mxu0 0.0
    %443 = vmatprep.subr.mxu0 0.0
    %444 = vmatpush1.msra.mxu0 0.0
    %445 = vmatprep.subr.mxu0 0.0
    %446 = vmatpush1.msra.mxu0 0.0
    %447 = vmatprep.subr.mxu0 0.0
    %448 = vmatpush1.msra.mxu0 0.0
    %449 = vmatprep.subr.mxu0 0.0
    %450 = vmatpush1.msra.mxu0 0.0
    %451 = vmatprep.subr.mxu0 0.0
    %452 = vmatpush1.msra.mxu0 0.0
    %453 = vmatprep.subr.mxu0 0.0
    %454 = vmatpush1.msra.mxu0 0.0
    %455 = vmatprep.subr.mxu0 0.0
    %456 = vmatpush1.msra.mxu0 0.0
    %457 = vmatprep.subr.mxu0 0.0
    %458 = vmatpush1.msra.mxu0 0.0
    %459 = vmatprep.subr.mxu0 0.0
    %460 = vmatpush1.msra.mxu0 0.0
    %461 = vmatprep.subr.mxu0 0.0
    %462 = vmatpush1.msra.mxu0 0.0
    %463 = vmatprep.subr.mxu0 %v42
    %464 = vmatpush1.msra.mxu0 %v41
    %465 = vmatprep.subr.mxu0 %v40
    %466 = vmatpush1.msra.mxu0 %v39
    %467 = vmatprep.subr.mxu0 %v38
    %468 = vmatpush1.msra.mxu0 %v37
    %469 = vmatprep.subr.mxu0 %v36
    %470 = vmatpush1.msra.mxu0 %v35
    %471 = vmatprep.subr.mxu0 0.0
    %472 = vmatpush2.msra.mxu0 0.0
    %473 = vmatprep.subr.mxu0 0.0
    %474 = vmatpush2.msra.mxu0 0.0
    %475 = vmatprep.subr.mxu0 0.0
    %476 = vmatpush2.msra.mxu0 0.0
    %477 = vmatprep.subr.mxu0 0.0
    %478 = vmatpush2.msra.mxu0 0.0
    %479 = vmatprep.subr.mxu0 0.0
    %480 = vmatpush2.msra.mxu0 0.0
    %481 = vmatprep.subr.mxu0 0.0
    %482 = vmatpush2.msra.mxu0 0.0
    %483 = vmatprep.subr.mxu0 0.0
    %484 = vmatpush2.msra.mxu0 0.0
    %485 = vmatprep.subr.mxu0 0.0
    %486 = vmatpush2.msra.mxu0 0.0
    %487 = vmatprep.subr.mxu0 0.0
    %488 = vmatpush2.msra.mxu0 0.0
    %489 = vmatprep.subr.mxu0 0.0
    %490 = vmatpush2.msra.mxu0 0.0
    %491 = vmatprep.subr.mxu0 0.0
    %492 = vmatpush2.msra.mxu0 0.0
    %493 = vmatprep.subr.mxu0 0.0
    %494 = vmatpush2.msra.mxu0 0.0
    %495 = vmatprep.subr.mxu0 0.0
    %496 = vmatpush2.msra.mxu0 0.0
    %497 = vmatprep.subr.mxu0 0.0
    %498 = vmatpush2.msra.mxu0 0.0
    %499 = vmatprep.subr.mxu0 0.0
    %500 = vmatpush2.msra.mxu0 0.0
    %501 = vmatprep.subr.mxu0 0.0
    %502 = vmatpush2.msra.mxu0 0.0
    %503 = vmatprep.mubr.f32.mxu0 0.0
    %504 = vmatmul.mubr.f32.gmra.mxu0 %v437
    %v505 = vpop.f32.mrf.mxu0
    %v506 = vadd.f32 0.0, %v505
    %v507 = vpop.f32.mrf.mxu0
    %v508 = vadd.f32 0.0, %v507
    %509 = vdwg.mxu0
    %s510 = scalar_lea.vmem %s0, 4
    %v511 = vld [vmem:[%s510] sm:$0x3]
    %v512 = vadd.f32 %v508, %v235
    %514 = vrot.lane.b32.xlu0 %v335, 32
    %v515 = vpop.permute.xlu0 %514
    %v516 = vsel %vm55, %v515, 0
    %518 = vmatprep.subr.mxu0 0.0
    %519 = vmatpush1.msra.mxu0 0.0
    %520 = vmatprep.subr.mxu0 0.0
    %521 = vmatpush1.msra.mxu0 0.0
    %522 = vmatprep.subr.mxu0 0.0
    %523 = vmatpush1.msra.mxu0 0.0
    %524 = vmatprep.subr.mxu0 0.0
    %525 = vmatpush1.msra.mxu0 0.0
    %526 = vmatprep.subr.mxu0 0.0
    %527 = vmatpush1.msra.mxu0 0.0
    %528 = vmatprep.subr.mxu0 0.0
    %529 = vmatpush1.msra.mxu0 0.0
    %530 = vmatprep.subr.mxu0 0.0
    %531 = vmatpush1.msra.mxu0 0.0
    %532 = vmatprep.subr.mxu0 0.0
    %533 = vmatpush1.msra.mxu0 0.0
    %534 = vmatprep.subr.mxu0 0.0
    %535 = vmatpush1.msra.mxu0 0.0
    %536 = vmatprep.subr.mxu0 0.0
    %537 = vmatpush1.msra.mxu0 0.0
    %538 = vmatprep.subr.mxu0 0.0
    %539 = vmatpush1.msra.mxu0 0.0
    %540 = vmatprep.subr.mxu0 0.0
    %541 = vmatpush1.msra.mxu0 0.0
    %542 = vmatprep.subr.mxu0 0.0
    %543 = vmatpush1.msra.mxu0 %v47
    %544 = vmatprep.subr.mxu0 0.0
    %545 = vmatpush1.msra.mxu0 %v46
    %546 = vmatprep.subr.mxu0 0.0
    %547 = vmatpush1.msra.mxu0 %v45
    %548 = vmatprep.subr.mxu0 0.0
    %549 = vmatpush1.msra.mxu0 %v44
    %550 = vmatprep.subr.mxu0 0.0
    %551 = vmatpush2.msra.mxu0 0.0
    %552 = vmatprep.subr.mxu0 0.0
    %553 = vmatpush2.msra.mxu0 0.0
    %554 = vmatprep.subr.mxu0 0.0
    %555 = vmatpush2.msra.mxu0 0.0
    %556 = vmatprep.subr.mxu0 0.0
    %557 = vmatpush2.msra.mxu0 0.0
    %558 = vmatprep.subr.mxu0 0.0
    %559 = vmatpush2.msra.mxu0 0.0
    %560 = vmatprep.subr.mxu0 0.0
    %561 = vmatpush2.msra.mxu0 0.0
    %562 = vmatprep.subr.mxu0 0.0
    %563 = vmatpush2.msra.mxu0 0.0
    %564 = vmatprep.subr.mxu0 0.0
    %565 = vmatpush2.msra.mxu0 0.0
    %566 = vmatprep.subr.mxu0 0.0
    %567 = vmatpush2.msra.mxu0 0.0
    %568 = vmatprep.subr.mxu0 0.0
    %569 = vmatpush2.msra.mxu0 0.0
    %570 = vmatprep.subr.mxu0 0.0
    %571 = vmatpush2.msra.mxu0 0.0
    %572 = vmatprep.subr.mxu0 0.0
    %573 = vmatpush2.msra.mxu0 0.0
    %574 = vmatprep.subr.mxu0 0.0
    %575 = vmatpush2.msra.mxu0 0.0
    %576 = vmatprep.subr.mxu0 0.0
    %577 = vmatpush2.msra.mxu0 0.0
    %578 = vmatprep.subr.mxu0 0.0
    %579 = vmatpush2.msra.mxu0 0.0
    %580 = vmatprep.subr.mxu0 0.0
    %581 = vmatpush2.msra.mxu0 0.0
    %582 = vmatprep.mubr.f32.mxu0 0.0
    %583 = vmatmul.mubr.f32.gmra.mxu0 %v516
    %v584 = vpop.f32.mrf.mxu0
    %v585 = vadd.f32 0.0, %v584
    %v586 = vpop.f32.mrf.mxu0
    %587 = vdwg.mxu0
    %v588 = vadd.f32 %v512, %v585
    %v589 = vxor.u32 %v588, 2147483648
    %v590 = vmul.f32 %v589, 1.442695
    %v591 = vpow.pop %v590
    %v592 = vadd.f32 %v591, 1.0
    %v593 = vrcp.pop %v592
    %v594 = vmul.f32 1.0, %v593
    %v595 = vtanh.pop %v588
    %v596 = vmul.f32 %v594, %v329
    %598 = vrot.lane.b32.xlu0 %v595, 64
    %v599 = vpop.permute.xlu0 %598
    %v601 = vmul.f32 %v594, %v599
    %603 = vrot.lane.b32.xlu0 %v601, 32
    %v604 = vpop.permute.xlu0 %603
    %v606 = vadd.f32 %v596, %v604
    %v607 = vtanh.pop %v606
    %609 = vrot.lane.b32.xlu0 %v607, 64
    %v610 = vpop.permute.xlu0 %609
    %v612 = vmul.f32 %v594, %v610
    %v614 = vsel %vm55, %v511, 0
    %616 = vmatprep.subr.mxu0 0.0
    %617 = vmatpush1.msra.mxu0 0.0
    %618 = vmatprep.subr.mxu0 0.0
    %619 = vmatpush1.msra.mxu0 0.0
    %620 = vmatprep.subr.mxu0 0.0
    %621 = vmatpush1.msra.mxu0 0.0
    %622 = vmatprep.subr.mxu0 0.0
    %623 = vmatpush1.msra.mxu0 0.0
    %624 = vmatprep.subr.mxu0 0.0
    %625 = vmatpush1.msra.mxu0 0.0
    %626 = vmatprep.subr.mxu0 0.0
    %627 = vmatpush1.msra.mxu0 0.0
    %628 = vmatprep.subr.mxu0 0.0
    %629 = vmatpush1.msra.mxu0 0.0
    %630 = vmatprep.subr.mxu0 0.0
    %631 = vmatpush1.msra.mxu0 0.0
    %632 = vmatprep.subr.mxu0 0.0
    %633 = vmatpush1.msra.mxu0 0.0
    %634 = vmatprep.subr.mxu0 0.0
    %635 = vmatpush1.msra.mxu0 0.0
    %636 = vmatprep.subr.mxu0 0.0
    %637 = vmatpush1.msra.mxu0 0.0
    %638 = vmatprep.subr.mxu0 0.0
    %639 = vmatpush1.msra.mxu0 0.0
    %640 = vmatprep.subr.mxu0 0.0
    %641 = vmatpush1.msra.mxu0 %v33
    %642 = vmatprep.subr.mxu0 0.0
    %643 = vmatpush1.msra.mxu0 %v32
    %644 = vmatprep.subr.mxu0 0.0
    %645 = vmatpush1.msra.mxu0 %v31
    %646 = vmatprep.subr.mxu0 0.0
    %647 = vmatpush1.msra.mxu0 %v30
    %648 = vmatprep.subr.mxu0 0.0
    %649 = vmatpush2.msra.mxu0 0.0
    %650 = vmatprep.subr.mxu0 0.0
    %651 = vmatpush2.msra.mxu0 0.0
    %652 = vmatprep.subr.mxu0 0.0
    %653 = vmatpush2.msra.mxu0 0.0
    %654 = vmatprep.subr.mxu0 0.0
    %655 = vmatpush2.msra.mxu0 0.0
    %656 = vmatprep.subr.mxu0 0.0
    %657 = vmatpush2.msra.mxu0 0.0
    %658 = vmatprep.subr.mxu0 0.0
    %659 = vmatpush2.msra.mxu0 0.0
    %660 = vmatprep.subr.mxu0 0.0
    %661 = vmatpush2.msra.mxu0 0.0
    %662 = vmatprep.subr.mxu0 0.0
    %663 = vmatpush2.msra.mxu0 0.0
    %664 = vmatprep.subr.mxu0 0.0
    %665 = vmatpush2.msra.mxu0 0.0
    %666 = vmatprep.subr.mxu0 0.0
    %667 = vmatpush2.msra.mxu0 0.0
    %668 = vmatprep.subr.mxu0 0.0
    %669 = vmatpush2.msra.mxu0 0.0
    %670 = vmatprep.subr.mxu0 0.0
    %671 = vmatpush2.msra.mxu0 0.0
    %672 = vmatprep.subr.mxu0 0.0
    %673 = vmatpush2.msra.mxu0 0.0
    %674 = vmatprep.subr.mxu0 0.0
    %675 = vmatpush2.msra.mxu0 0.0
    %676 = vmatprep.subr.mxu0 0.0
    %677 = vmatpush2.msra.mxu0 0.0
    %678 = vmatprep.subr.mxu0 0.0
    %679 = vmatpush2.msra.mxu0 0.0
    %680 = vmatprep.mubr.f32.mxu0 0.0
    %681 = vmatmul.mubr.f32.gmra.mxu0 %v614
    %v682 = vpop.f32.mrf.mxu0
    %v683 = vadd.f32 %v53, %v682
    %v684 = vpop.f32.mrf.mxu0
    %685 = vdwg.mxu0
    %v686 = vadd.f32 %v683, %v506
    %v687 = vxor.u32 %v686, 2147483648
    %v688 = vmul.f32 %v687, 1.442695
    %v689 = vpow.pop %v688
    %v690 = vadd.f32 %v689, 1.0
    %v691 = vrcp.pop %v690
    %v692 = vmul.f32 1.0, %v691
    %v693 = vtanh.pop %v686
    %v694 = vmul.f32 %v692, %v427
    %696 = vrot.lane.b32.xlu0 %v693, 64
    %v697 = vpop.permute.xlu0 %696
    %v699 = vmul.f32 %v692, %v697
    %701 = vrot.lane.b32.xlu0 %v699, 32
    %v702 = vpop.permute.xlu0 %701
    %v704 = vadd.f32 %v694, %v702
    %v705 = vtanh.pop %v704
    %707 = vrot.lane.b32.xlu0 %v705, 64
    %v708 = vpop.permute.xlu0 %707
    %v710 = vmul.f32 %v692, %v708
    %712 = vrot.lane.b32.xlu0 %v710, 32
    %v713 = vpop.permute.xlu0 %712
    %v714 = vsel %vm55, %v713, 0
    %716 = vmatprep.subr.mxu0 0.0
    %717 = vmatpush1.msra.mxu0 0.0
    %718 = vmatprep.subr.mxu0 0.0
    %719 = vmatpush1.msra.mxu0 0.0
    %720 = vmatprep.subr.mxu0 0.0
    %721 = vmatpush1.msra.mxu0 0.0
    %722 = vmatprep.subr.mxu0 0.0
    %723 = vmatpush1.msra.mxu0 0.0
    %724 = vmatprep.subr.mxu0 0.0
    %725 = vmatpush1.msra.mxu0 0.0
    %726 = vmatprep.subr.mxu0 0.0
    %727 = vmatpush1.msra.mxu0 0.0
    %728 = vmatprep.subr.mxu0 0.0
    %729 = vmatpush1.msra.mxu0 0.0
    %730 = vmatprep.subr.mxu0 0.0
    %731 = vmatpush1.msra.mxu0 0.0
    %732 = vmatprep.subr.mxu0 0.0
    %733 = vmatpush1.msra.mxu0 0.0
    %734 = vmatprep.subr.mxu0 0.0
    %735 = vmatpush1.msra.mxu0 0.0
    %736 = vmatprep.subr.mxu0 0.0
    %737 = vmatpush1.msra.mxu0 0.0
    %738 = vmatprep.subr.mxu0 0.0
    %739 = vmatpush1.msra.mxu0 0.0
    %740 = vmatprep.subr.mxu0 %v42
    %741 = vmatpush1.msra.mxu0 %v41
    %742 = vmatprep.subr.mxu0 %v40
    %743 = vmatpush1.msra.mxu0 %v39
    %744 = vmatprep.subr.mxu0 %v38
    %745 = vmatpush1.msra.mxu0 %v37
    %746 = vmatprep.subr.mxu0 %v36
    %747 = vmatpush1.msra.mxu0 %v35
    %748 = vmatprep.subr.mxu0 0.0
    %749 = vmatpush2.msra.mxu0 0.0
    %750 = vmatprep.subr.mxu0 0.0
    %751 = vmatpush2.msra.mxu0 0.0
    %752 = vmatprep.subr.mxu0 0.0
    %753 = vmatpush2.msra.mxu0 0.0
    %754 = vmatprep.subr.mxu0 0.0
    %755 = vmatpush2.msra.mxu0 0.0
    %756 = vmatprep.subr.mxu0 0.0
    %757 = vmatpush2.msra.mxu0 0.0
    %758 = vmatprep.subr.mxu0 0.0
    %759 = vmatpush2.msra.mxu0 0.0
    %760 = vmatprep.subr.mxu0 0.0
    %761 = vmatpush2.msra.mxu0 0.0
    %762 = vmatprep.subr.mxu0 0.0
    %763 = vmatpush2.msra.mxu0 0.0
    %764 = vmatprep.subr.mxu0 0.0
    %765 = vmatpush2.msra.mxu0 0.0
    %766 = vmatprep.subr.mxu0 0.0
    %767 = vmatpush2.msra.mxu0 0.0
    %768 = vmatprep.subr.mxu0 0.0
    %769 = vmatpush2.msra.mxu0 0.0
    %770 = vmatprep.subr.mxu0 0.0
    %771 = vmatpush2.msra.mxu0 0.0
    %772 = vmatprep.subr.mxu0 0.0
    %773 = vmatpush2.msra.mxu0 0.0
    %774 = vmatprep.subr.mxu0 0.0
    %775 = vmatpush2.msra.mxu0 0.0
    %776 = vmatprep.subr.mxu0 0.0
    %777 = vmatpush2.msra.mxu0 0.0
    %778 = vmatprep.subr.mxu0 0.0
    %779 = vmatpush2.msra.mxu0 0.0
    %780 = vmatprep.mubr.f32.mxu0 0.0
    %781 = vmatmul.mubr.f32.gmra.mxu0 %v714
    %v782 = vpop.f32.mrf.mxu0
    %v783 = vadd.f32 0.0, %v782
    %v784 = vpop.f32.mrf.mxu0
    %v785 = vadd.f32 0.0, %v784
    %786 = vdwg.mxu0
    %s787 = scalar_lea.vmem %s0, 6
    %v788 = vld [vmem:[%s787] sm:$0x3]
    %v789 = vadd.f32 %v785, %v235
    %791 = vrot.lane.b32.xlu0 %v612, 32
    %v792 = vpop.permute.xlu0 %791
    %v793 = vsel %vm55, %v792, 0
    %795 = vmatprep.subr.mxu0 0.0
    %796 = vmatpush1.msra.mxu0 0.0
    %797 = vmatprep.subr.mxu0 0.0
    %798 = vmatpush1.msra.mxu0 0.0
    %799 = vmatprep.subr.mxu0 0.0
    %800 = vmatpush1.msra.mxu0 0.0
    %801 = vmatprep.subr.mxu0 0.0
    %802 = vmatpush1.msra.mxu0 0.0
    %803 = vmatprep.subr.mxu0 0.0
    %804 = vmatpush1.msra.mxu0 0.0
    %805 = vmatprep.subr.mxu0 0.0
    %806 = vmatpush1.msra.mxu0 0.0
    %807 = vmatprep.subr.mxu0 0.0
    %808 = vmatpush1.msra.mxu0 0.0
    %809 = vmatprep.subr.mxu0 0.0
    %810 = vmatpush1.msra.mxu0 0.0
    %811 = vmatprep.subr.mxu0 0.0
    %812 = vmatpush1.msra.mxu0 0.0
    %813 = vmatprep.subr.mxu0 0.0
    %814 = vmatpush1.msra.mxu0 0.0
    %815 = vmatprep.subr.mxu0 0.0
    %816 = vmatpush1.msra.mxu0 0.0
    %817 = vmatprep.subr.mxu0 0.0
    %818 = vmatpush1.msra.mxu0 0.0
    %819 = vmatprep.subr.mxu0 0.0
    %820 = vmatpush1.msra.mxu0 %v47
    %821 = vmatprep.subr.mxu0 0.0
    %822 = vmatpush1.msra.mxu0 %v46
    %823 = vmatprep.subr.mxu0 0.0
    %824 = vmatpush1.msra.mxu0 %v45
    %825 = vmatprep.subr.mxu0 0.0
    %826 = vmatpush1.msra.mxu0 %v44
    %827 = vmatprep.subr.mxu0 0.0
    %828 = vmatpush2.msra.mxu0 0.0
    %829 = vmatprep.subr.mxu0 0.0
    %830 = vmatpush2.msra.mxu0 0.0
    %831 = vmatprep.subr.mxu0 0.0
    %832 = vmatpush2.msra.mxu0 0.0
    %833 = vmatprep.subr.mxu0 0.0
    %834 = vmatpush2.msra.mxu0 0.0
    %835 = vmatprep.subr.mxu0 0.0
    %836 = vmatpush2.msra.mxu0 0.0
    %837 = vmatprep.subr.mxu0 0.0
    %838 = vmatpush2.msra.mxu0 0.0
    %839 = vmatprep.subr.mxu0 0.0
    %840 = vmatpush2.msra.mxu0 0.0
    %841 = vmatprep.subr.mxu0 0.0
    %842 = vmatpush2.msra.mxu0 0.0
    %843 = vmatprep.subr.mxu0 0.0
    %844 = vmatpush2.msra.mxu0 0.0
    %845 = vmatprep.subr.mxu0 0.0
    %846 = vmatpush2.msra.mxu0 0.0
    %847 = vmatprep.subr.mxu0 0.0
    %848 = vmatpush2.msra.mxu0 0.0
    %849 = vmatprep.subr.mxu0 0.0
    %850 = vmatpush2.msra.mxu0 0.0
    %851 = vmatprep.subr.mxu0 0.0
    %852 = vmatpush2.msra.mxu0 0.0
    %853 = vmatprep.subr.mxu0 0.0
    %854 = vmatpush2.msra.mxu0 0.0
    %855 = vmatprep.subr.mxu0 0.0
    %856 = vmatpush2.msra.mxu0 0.0
    %857 = vmatprep.subr.mxu0 0.0
    %858 = vmatpush2.msra.mxu0 0.0
    %859 = vmatprep.mubr.f32.mxu0 0.0
    %860 = vmatmul.mubr.f32.gmra.mxu0 %v793
    %v861 = vpop.f32.mrf.mxu0
    %v862 = vadd.f32 0.0, %v861
    %v863 = vpop.f32.mrf.mxu0
    %864 = vdwg.mxu0
    %v865 = vadd.f32 %v789, %v862
    %v866 = vxor.u32 %v865, 2147483648
    %v867 = vmul.f32 %v866, 1.442695
    %v868 = vpow.pop %v867
    %v869 = vadd.f32 %v868, 1.0
    %v870 = vrcp.pop %v869
    %v871 = vmul.f32 1.0, %v870
    %v872 = vtanh.pop %v865
    %v873 = vmul.f32 %v871, %v606
    %875 = vrot.lane.b32.xlu0 %v872, 64
    %v876 = vpop.permute.xlu0 %875
    %v878 = vmul.f32 %v871, %v876
    %880 = vrot.lane.b32.xlu0 %v878, 32
    %v881 = vpop.permute.xlu0 %880
    %v883 = vadd.f32 %v873, %v881
    %v884 = vtanh.pop %v883
    %886 = vrot.lane.b32.xlu0 %v884, 64
    %v887 = vpop.permute.xlu0 %886
    %v889 = vmul.f32 %v871, %v887
    %v891 = vsel %vm55, %v788, 0
    %893 = vmatprep.subr.mxu0 0.0
    %894 = vmatpush1.msra.mxu0 0.0
    %895 = vmatprep.subr.mxu0 0.0
    %896 = vmatpush1.msra.mxu0 0.0
    %897 = vmatprep.subr.mxu0 0.0
    %898 = vmatpush1.msra.mxu0 0.0
    %899 = vmatprep.subr.mxu0 0.0
    %900 = vmatpush1.msra.mxu0 0.0
    %901 = vmatprep.subr.mxu0 0.0
    %902 = vmatpush1.msra.mxu0 0.0
    %903 = vmatprep.subr.mxu0 0.0
    %904 = vmatpush1.msra.mxu0 0.0
    %905 = vmatprep.subr.mxu0 0.0
    %906 = vmatpush1.msra.mxu0 0.0
    %907 = vmatprep.subr.mxu0 0.0
    %908 = vmatpush1.msra.mxu0 0.0
    %909 = vmatprep.subr.mxu0 0.0
    %910 = vmatpush1.msra.mxu0 0.0
    %911 = vmatprep.subr.mxu0 0.0
    %912 = vmatpush1.msra.mxu0 0.0
    %913 = vmatprep.subr.mxu0 0.0
    %914 = vmatpush1.msra.mxu0 0.0
    %915 = vmatprep.subr.mxu0 0.0
    %916 = vmatpush1.msra.mxu0 0.0
    %917 = vmatprep.subr.mxu0 0.0
    %918 = vmatpush1.msra.mxu0 %v33
    %919 = vmatprep.subr.mxu0 0.0
    %920 = vmatpush1.msra.mxu0 %v32
    %921 = vmatprep.subr.mxu0 0.0
    %922 = vmatpush1.msra.mxu0 %v31
    %923 = vmatprep.subr.mxu0 0.0
    %924 = vmatpush1.msra.mxu0 %v30
    %925 = vmatprep.subr.mxu0 0.0
    %926 = vmatpush2.msra.mxu0 0.0
    %927 = vmatprep.subr.mxu0 0.0
    %928 = vmatpush2.msra.mxu0 0.0
    %929 = vmatprep.subr.mxu0 0.0
    %930 = vmatpush2.msra.mxu0 0.0
    %931 = vmatprep.subr.mxu0 0.0
    %932 = vmatpush2.msra.mxu0 0.0
    %933 = vmatprep.subr.mxu0 0.0
    %934 = vmatpush2.msra.mxu0 0.0
    %935 = vmatprep.subr.mxu0 0.0
    %936 = vmatpush2.msra.mxu0 0.0
    %937 = vmatprep.subr.mxu0 0.0
    %938 = vmatpush2.msra.mxu0 0.0
    %939 = vmatprep.subr.mxu0 0.0
    %940 = vmatpush2.msra.mxu0 0.0
    %941 = vmatprep.subr.mxu0 0.0
    %942 = vmatpush2.msra.mxu0 0.0
    %943 = vmatprep.subr.mxu0 0.0
    %944 = vmatpush2.msra.mxu0 0.0
    %945 = vmatprep.subr.mxu0 0.0
    %946 = vmatpush2.msra.mxu0 0.0
    %947 = vmatprep.subr.mxu0 0.0
    %948 = vmatpush2.msra.mxu0 0.0
    %949 = vmatprep.subr.mxu0 0.0
    %950 = vmatpush2.msra.mxu0 0.0
    %951 = vmatprep.subr.mxu0 0.0
    %952 = vmatpush2.msra.mxu0 0.0
    %953 = vmatprep.subr.mxu0 0.0
    %954 = vmatpush2.msra.mxu0 0.0
    %955 = vmatprep.subr.mxu0 0.0
    %956 = vmatpush2.msra.mxu0 0.0
    %957 = vmatprep.mubr.f32.mxu0 0.0
    %958 = vmatmul.mubr.f32.gmra.mxu0 %v891
    %v959 = vpop.f32.mrf.mxu0
    %v960 = vadd.f32 %v53, %v959
    %v961 = vpop.f32.mrf.mxu0
    %962 = vdwg.mxu0
    %v963 = vadd.f32 %v960, %v783
    %v964 = vxor.u32 %v963, 2147483648
    %v965 = vmul.f32 %v964, 1.442695
    %v966 = vpow.pop %v965
    %v967 = vadd.f32 %v966, 1.0
    %v968 = vrcp.pop %v967
    %v969 = vmul.f32 1.0, %v968
    %v970 = vtanh.pop %v963
    %v971 = vmul.f32 %v969, %v704
    %973 = vrot.lane.b32.xlu0 %v970, 64
    %v974 = vpop.permute.xlu0 %973
    %v976 = vmul.f32 %v969, %v974
    %978 = vrot.lane.b32.xlu0 %v976, 32
    %v979 = vpop.permute.xlu0 %978
    %v981 = vadd.f32 %v971, %v979
    %v982 = vtanh.pop %v981
    %984 = vrot.lane.b32.xlu0 %v982, 64
    %v985 = vpop.permute.xlu0 %984
    %v987 = vmul.f32 %v969, %v985
    %989 = vrot.lane.b32.xlu0 %v987, 32
    %v990 = vpop.permute.xlu0 %989
    %v991 = vsel %vm55, %v990, 0
    %993 = vmatprep.subr.mxu0 0.0
    %994 = vmatpush1.msra.mxu0 0.0
    %995 = vmatprep.subr.mxu0 0.0
    %996 = vmatpush1.msra.mxu0 0.0
    %997 = vmatprep.subr.mxu0 0.0
    %998 = vmatpush1.msra.mxu0 0.0
    %999 = vmatprep.subr.mxu0 0.0
    %1000 = vmatpush1.msra.mxu0 0.0
    %1001 = vmatprep.subr.mxu0 0.0
    %1002 = vmatpush1.msra.mxu0 0.0
    %1003 = vmatprep.subr.mxu0 0.0
    %1004 = vmatpush1.msra.mxu0 0.0
    %1005 = vmatprep.subr.mxu0 0.0
    %1006 = vmatpush1.msra.mxu0 0.0
    %1007 = vmatprep.subr.mxu0 0.0
    %1008 = vmatpush1.msra.mxu0 0.0
    %1009 = vmatprep.subr.mxu0 0.0
    %1010 = vmatpush1.msra.mxu0 0.0
    %1011 = vmatprep.subr.mxu0 0.0
    %1012 = vmatpush1.msra.mxu0 0.0
    %1013 = vmatprep.subr.mxu0 0.0
    %1014 = vmatpush1.msra.mxu0 0.0
    %1015 = vmatprep.subr.mxu0 0.0
    %1016 = vmatpush1.msra.mxu0 0.0
    %1017 = vmatprep.subr.mxu0 %v42
    %1018 = vmatpush1.msra.mxu0 %v41
    %1019 = vmatprep.subr.mxu0 %v40
    %1020 = vmatpush1.msra.mxu0 %v39
    %1021 = vmatprep.subr.mxu0 %v38
    %1022 = vmatpush1.msra.mxu0 %v37
    %1023 = vmatprep.subr.mxu0 %v36
    %1024 = vmatpush1.msra.mxu0 %v35
    %1025 = vmatprep.subr.mxu0 0.0
    %1026 = vmatpush2.msra.mxu0 0.0
    %1027 = vmatprep.subr.mxu0 0.0
    %1028 = vmatpush2.msra.mxu0 0.0
    %1029 = vmatprep.subr.mxu0 0.0
    %1030 = vmatpush2.msra.mxu0 0.0
    %1031 = vmatprep.subr.mxu0 0.0
    %1032 = vmatpush2.msra.mxu0 0.0
    %1033 = vmatprep.subr.mxu0 0.0
    %1034 = vmatpush2.msra.mxu0 0.0
    %1035 = vmatprep.subr.mxu0 0.0
    %1036 = vmatpush2.msra.mxu0 0.0
    %1037 = vmatprep.subr.mxu0 0.0
    %1038 = vmatpush2.msra.mxu0 0.0
    %1039 = vmatprep.subr.mxu0 0.0
    %1040 = vmatpush2.msra.mxu0 0.0
    %1041 = vmatprep.subr.mxu0 0.0
    %1042 = vmatpush2.msra.mxu0 0.0
    %1043 = vmatprep.subr.mxu0 0.0
    %1044 = vmatpush2.msra.mxu0 0.0
    %1045 = vmatprep.subr.mxu0 0.0
    %1046 = vmatpush2.msra.mxu0 0.0
    %1047 = vmatprep.subr.mxu0 0.0
    %1048 = vmatpush2.msra.mxu0 0.0
    %1049 = vmatprep.subr.mxu0 0.0
    %1050 = vmatpush2.msra.mxu0 0.0
    %1051 = vmatprep.subr.mxu0 0.0
    %1052 = vmatpush2.msra.mxu0 0.0
    %1053 = vmatprep.subr.mxu0 0.0
    %1054 = vmatpush2.msra.mxu0 0.0
    %1055 = vmatprep.subr.mxu0 0.0
    %1056 = vmatpush2.msra.mxu0 0.0
    %1057 = vmatprep.mubr.f32.mxu0 0.0
    %1058 = vmatmul.mubr.f32.gmra.mxu0 %v991
    %v1059 = vpop.f32.mrf.mxu0
    %v1060 = vadd.f32 0.0, %v1059
    %v1061 = vpop.f32.mrf.mxu0
    %v1062 = vadd.f32 0.0, %v1061
    %1063 = vdwg.mxu0
    %s1064 = scalar_lea.vmem %s0, 8
    %v1065 = vld [vmem:[%s1064] sm:$0x3]
    %v1066 = vadd.f32 %v1062, %v235
    %1068 = vrot.lane.b32.xlu0 %v889, 32
    %v1069 = vpop.permute.xlu0 %1068
    %v1070 = vsel %vm55, %v1069, 0
    %1072 = vmatprep.subr.mxu0 0.0
    %1073 = vmatpush1.msra.mxu0 0.0
    %1074 = vmatprep.subr.mxu0 0.0
    %1075 = vmatpush1.msra.mxu0 0.0
    %1076 = vmatprep.subr.mxu0 0.0
    %1077 = vmatpush1.msra.mxu0 0.0
    %1078 = vmatprep.subr.mxu0 0.0
    %1079 = vmatpush1.msra.mxu0 0.0
    %1080 = vmatprep.subr.mxu0 0.0
    %1081 = vmatpush1.msra.mxu0 0.0
    %1082 = vmatprep.subr.mxu0 0.0
    %1083 = vmatpush1.msra.mxu0 0.0
    %1084 = vmatprep.subr.mxu0 0.0
    %1085 = vmatpush1.msra.mxu0 0.0
    %1086 = vmatprep.subr.mxu0 0.0
    %1087 = vmatpush1.msra.mxu0 0.0
    %1088 = vmatprep.subr.mxu0 0.0
    %1089 = vmatpush1.msra.mxu0 0.0
    %1090 = vmatprep.subr.mxu0 0.0
    %1091 = vmatpush1.msra.mxu0 0.0
    %1092 = vmatprep.subr.mxu0 0.0
    %1093 = vmatpush1.msra.mxu0 0.0
    %1094 = vmatprep.subr.mxu0 0.0
    %1095 = vmatpush1.msra.mxu0 0.0
    %1096 = vmatprep.subr.mxu0 0.0
    %1097 = vmatpush1.msra.mxu0 %v47
    %1098 = vmatprep.subr.mxu0 0.0
    %1099 = vmatpush1.msra.mxu0 %v46
    %1100 = vmatprep.subr.mxu0 0.0
    %1101 = vmatpush1.msra.mxu0 %v45
    %1102 = vmatprep.subr.mxu0 0.0
    %1103 = vmatpush1.msra.mxu0 %v44
    %1104 = vmatprep.subr.mxu0 0.0
    %1105 = vmatpush2.msra.mxu0 0.0
    %1106 = vmatprep.subr.mxu0 0.0
    %1107 = vmatpush2.msra.mxu0 0.0
    %1108 = vmatprep.subr.mxu0 0.0
    %1109 = vmatpush2.msra.mxu0 0.0
    %1110 = vmatprep.subr.mxu0 0.0
    %1111 = vmatpush2.msra.mxu0 0.0
    %1112 = vmatprep.subr.mxu0 0.0
    %1113 = vmatpush2.msra.mxu0 0.0
    %1114 = vmatprep.subr.mxu0 0.0
    %1115 = vmatpush2.msra.mxu0 0.0
    %1116 = vmatprep.subr.mxu0 0.0
    %1117 = vmatpush2.msra.mxu0 0.0
    %1118 = vmatprep.subr.mxu0 0.0
    %1119 = vmatpush2.msra.mxu0 0.0
    %1120 = vmatprep.subr.mxu0 0.0
    %1121 = vmatpush2.msra.mxu0 0.0
    %1122 = vmatprep.subr.mxu0 0.0
    %1123 = vmatpush2.msra.mxu0 0.0
    %1124 = vmatprep.subr.mxu0 0.0
    %1125 = vmatpush2.msra.mxu0 0.0
    %1126 = vmatprep.subr.mxu0 0.0
    %1127 = vmatpush2.msra.mxu0 0.0
    %1128 = vmatprep.subr.mxu0 0.0
    %1129 = vmatpush2.msra.mxu0 0.0
    %1130 = vmatprep.subr.mxu0 0.0
    %1131 = vmatpush2.msra.mxu0 0.0
    %1132 = vmatprep.subr.mxu0 0.0
    %1133 = vmatpush2.msra.mxu0 0.0
    %1134 = vmatprep.subr.mxu0 0.0
    %1135 = vmatpush2.msra.mxu0 0.0
    %1136 = vmatprep.mubr.f32.mxu0 0.0
    %1137 = vmatmul.mubr.f32.gmra.mxu0 %v1070
    %v1138 = vpop.f32.mrf.mxu0
    %v1139 = vadd.f32 0.0, %v1138
    %v1140 = vpop.f32.mrf.mxu0
    %1141 = vdwg.mxu0
    %v1142 = vadd.f32 %v1066, %v1139
    %v1143 = vxor.u32 %v1142, 2147483648
    %v1144 = vmul.f32 %v1143, 1.442695
    %v1145 = vpow.pop %v1144
    %v1146 = vadd.f32 %v1145, 1.0
    %v1147 = vrcp.pop %v1146
    %v1148 = vmul.f32 1.0, %v1147
    %v1149 = vtanh.pop %v1142
    %v1150 = vmul.f32 %v1148, %v883
    %1152 = vrot.lane.b32.xlu0 %v1149, 64
    %v1153 = vpop.permute.xlu0 %1152
    %v1155 = vmul.f32 %v1148, %v1153
    %1157 = vrot.lane.b32.xlu0 %v1155, 32
    %v1158 = vpop.permute.xlu0 %1157
    %v1160 = vadd.f32 %v1150, %v1158
    %v1161 = vtanh.pop %v1160
    %1163 = vrot.lane.b32.xlu0 %v1161, 64
    %v1164 = vpop.permute.xlu0 %1163
    %v1166 = vmul.f32 %v1148, %v1164
    %v1168 = vsel %vm55, %v1065, 0
    %1170 = vmatprep.subr.mxu0 0.0
    %1171 = vmatpush1.msra.mxu0 0.0
    %1172 = vmatprep.subr.mxu0 0.0
    %1173 = vmatpush1.msra.mxu0 0.0
    %1174 = vmatprep.subr.mxu0 0.0
    %1175 = vmatpush1.msra.mxu0 0.0
    %1176 = vmatprep.subr.mxu0 0.0
    %1177 = vmatpush1.msra.mxu0 0.0
    %1178 = vmatprep.subr.mxu0 0.0
    %1179 = vmatpush1.msra.mxu0 0.0
    %1180 = vmatprep.subr.mxu0 0.0
    %1181 = vmatpush1.msra.mxu0 0.0
    %1182 = vmatprep.subr.mxu0 0.0
    %1183 = vmatpush1.msra.mxu0 0.0
    %1184 = vmatprep.subr.mxu0 0.0
    %1185 = vmatpush1.msra.mxu0 0.0
    %1186 = vmatprep.subr.mxu0 0.0
    %1187 = vmatpush1.msra.mxu0 0.0
    %1188 = vmatprep.subr.mxu0 0.0
    %1189 = vmatpush1.msra.mxu0 0.0
    %1190 = vmatprep.subr.mxu0 0.0
    %1191 = vmatpush1.msra.mxu0 0.0
    %1192 = vmatprep.subr.mxu0 0.0
    %1193 = vmatpush1.msra.mxu0 0.0
    %1194 = vmatprep.subr.mxu0 0.0
    %1195 = vmatpush1.msra.mxu0 %v33
    %1196 = vmatprep.subr.mxu0 0.0
    %1197 = vmatpush1.msra.mxu0 %v32
    %1198 = vmatprep.subr.mxu0 0.0
    %1199 = vmatpush1.msra.mxu0 %v31
    %1200 = vmatprep.subr.mxu0 0.0
    %1201 = vmatpush1.msra.mxu0 %v30
    %1202 = vmatprep.subr.mxu0 0.0
    %1203 = vmatpush2.msra.mxu0 0.0
    %1204 = vmatprep.subr.mxu0 0.0
    %1205 = vmatpush2.msra.mxu0 0.0
    %1206 = vmatprep.subr.mxu0 0.0
    %1207 = vmatpush2.msra.mxu0 0.0
    %1208 = vmatprep.subr.mxu0 0.0
    %1209 = vmatpush2.msra.mxu0 0.0
    %1210 = vmatprep.subr.mxu0 0.0
    %1211 = vmatpush2.msra.mxu0 0.0
    %1212 = vmatprep.subr.mxu0 0.0
    %1213 = vmatpush2.msra.mxu0 0.0
    %1214 = vmatprep.subr.mxu0 0.0
    %1215 = vmatpush2.msra.mxu0 0.0
    %1216 = vmatprep.subr.mxu0 0.0
    %1217 = vmatpush2.msra.mxu0 0.0
    %1218 = vmatprep.subr.mxu0 0.0
    %1219 = vmatpush2.msra.mxu0 0.0
    %1220 = vmatprep.subr.mxu0 0.0
    %1221 = vmatpush2.msra.mxu0 0.0
    %1222 = vmatprep.subr.mxu0 0.0
    %1223 = vmatpush2.msra.mxu0 0.0
    %1224 = vmatprep.subr.mxu0 0.0
    %1225 = vmatpush2.msra.mxu0 0.0
    %1226 = vmatprep.subr.mxu0 0.0
    %1227 = vmatpush2.msra.mxu0 0.0
    %1228 = vmatprep.subr.mxu0 0.0
    %1229 = vmatpush2.msra.mxu0 0.0
    %1230 = vmatprep.subr.mxu0 0.0
    %1231 = vmatpush2.msra.mxu0 0.0
    %1232 = vmatprep.subr.mxu0 0.0
    %1233 = vmatpush2.msra.mxu0 0.0
    %1234 = vmatprep.mubr.f32.mxu0 0.0
    %1235 = vmatmul.mubr.f32.gmra.mxu0 %v1168
    %v1236 = vpop.f32.mrf.mxu0
    %v1237 = vadd.f32 %v53, %v1236
    %v1238 = vpop.f32.mrf.mxu0
    %1239 = vdwg.mxu0
    %v1240 = vadd.f32 %v1237, %v1060
    %v1241 = vxor.u32 %v1240, 2147483648
    %v1242 = vmul.f32 %v1241, 1.442695
    %v1243 = vpow.pop %v1242
    %v1244 = vadd.f32 %v1243, 1.0
    %v1245 = vrcp.pop %v1244
    %v1246 = vmul.f32 1.0, %v1245
    %v1247 = vtanh.pop %v1240
    %v1248 = vmul.f32 %v1246, %v981
    %1250 = vrot.lane.b32.xlu0 %v1247, 64
    %v1251 = vpop.permute.xlu0 %1250
    %v1253 = vmul.f32 %v1246, %v1251
    %1255 = vrot.lane.b32.xlu0 %v1253, 32
    %v1256 = vpop.permute.xlu0 %1255
    %v1258 = vadd.f32 %v1248, %v1256
    %v1259 = vtanh.pop %v1258
    %1261 = vrot.lane.b32.xlu0 %v1259, 64
    %v1262 = vpop.permute.xlu0 %1261
    %v1264 = vmul.f32 %v1246, %v1262
    %1266 = vrot.lane.b32.xlu0 %v1264, 32
    %v1267 = vpop.permute.xlu0 %1266
    %v1268 = vsel %vm55, %v1267, 0
    %1270 = vmatprep.subr.mxu0 0.0
    %1271 = vmatpush1.msra.mxu0 0.0
    %1272 = vmatprep.subr.mxu0 0.0
    %1273 = vmatpush1.msra.mxu0 0.0
    %1274 = vmatprep.subr.mxu0 0.0
    %1275 = vmatpush1.msra.mxu0 0.0
    %1276 = vmatprep.subr.mxu0 0.0
    %1277 = vmatpush1.msra.mxu0 0.0
    %1278 = vmatprep.subr.mxu0 0.0
    %1279 = vmatpush1.msra.mxu0 0.0
    %1280 = vmatprep.subr.mxu0 0.0
    %1281 = vmatpush1.msra.mxu0 0.0
    %1282 = vmatprep.subr.mxu0 0.0
    %1283 = vmatpush1.msra.mxu0 0.0
    %1284 = vmatprep.subr.mxu0 0.0
    %1285 = vmatpush1.msra.mxu0 0.0
    %1286 = vmatprep.subr.mxu0 0.0
    %1287 = vmatpush1.msra.mxu0 0.0
    %1288 = vmatprep.subr.mxu0 0.0
    %1289 = vmatpush1.msra.mxu0 0.0
    %1290 = vmatprep.subr.mxu0 0.0
    %1291 = vmatpush1.msra.mxu0 0.0
    %1292 = vmatprep.subr.mxu0 0.0
    %1293 = vmatpush1.msra.mxu0 0.0
    %1294 = vmatprep.subr.mxu0 %v42
    %1295 = vmatpush1.msra.mxu0 %v41
    %1296 = vmatprep.subr.mxu0 %v40
    %1297 = vmatpush1.msra.mxu0 %v39
    %1298 = vmatprep.subr.mxu0 %v38
    %1299 = vmatpush1.msra.mxu0 %v37
    %1300 = vmatprep.subr.mxu0 %v36
    %1301 = vmatpush1.msra.mxu0 %v35
    %1302 = vmatprep.subr.mxu0 0.0
    %1303 = vmatpush2.msra.mxu0 0.0
    %1304 = vmatprep.subr.mxu0 0.0
    %1305 = vmatpush2.msra.mxu0 0.0
    %1306 = vmatprep.subr.mxu0 0.0
    %1307 = vmatpush2.msra.mxu0 0.0
    %1308 = vmatprep.subr.mxu0 0.0
    %1309 = vmatpush2.msra.mxu0 0.0
    %1310 = vmatprep.subr.mxu0 0.0
    %1311 = vmatpush2.msra.mxu0 0.0
    %1312 = vmatprep.subr.mxu0 0.0
    %1313 = vmatpush2.msra.mxu0 0.0
    %1314 = vmatprep.subr.mxu0 0.0
    %1315 = vmatpush2.msra.mxu0 0.0
    %1316 = vmatprep.subr.mxu0 0.0
    %1317 = vmatpush2.msra.mxu0 0.0
    %1318 = vmatprep.subr.mxu0 0.0
    %1319 = vmatpush2.msra.mxu0 0.0
    %1320 = vmatprep.subr.mxu0 0.0
    %1321 = vmatpush2.msra.mxu0 0.0
    %1322 = vmatprep.subr.mxu0 0.0
    %1323 = vmatpush2.msra.mxu0 0.0
    %1324 = vmatprep.subr.mxu0 0.0
    %1325 = vmatpush2.msra.mxu0 0.0
    %1326 = vmatprep.subr.mxu0 0.0
    %1327 = vmatpush2.msra.mxu0 0.0
    %1328 = vmatprep.subr.mxu0 0.0
    %1329 = vmatpush2.msra.mxu0 0.0
    %1330 = vmatprep.subr.mxu0 0.0
    %1331 = vmatpush2.msra.mxu0 0.0
    %1332 = vmatprep.subr.mxu0 0.0
    %1333 = vmatpush2.msra.mxu0 0.0
    %1334 = vmatprep.mubr.f32.mxu0 0.0
    %1335 = vmatmul.mubr.f32.gmra.mxu0 %v1268
    %v1336 = vpop.f32.mrf.mxu0
    %v1337 = vadd.f32 0.0, %v1336
    %v1338 = vpop.f32.mrf.mxu0
    %v1339 = vadd.f32 0.0, %v1338
    %1340 = vdwg.mxu0
    %s1341 = scalar_lea.vmem %s0, 10
    %v1342 = vld [vmem:[%s1341] sm:$0x3]
    %v1343 = vadd.f32 %v1339, %v235
    %1345 = vrot.lane.b32.xlu0 %v1166, 32
    %v1346 = vpop.permute.xlu0 %1345
    %v1347 = vsel %vm55, %v1346, 0
    %1349 = vmatprep.subr.mxu0 0.0
    %1350 = vmatpush1.msra.mxu0 0.0
    %1351 = vmatprep.subr.mxu0 0.0
    %1352 = vmatpush1.msra.mxu0 0.0
    %1353 = vmatprep.subr.mxu0 0.0
    %1354 = vmatpush1.msra.mxu0 0.0
    %1355 = vmatprep.subr.mxu0 0.0
    %1356 = vmatpush1.msra.mxu0 0.0
    %1357 = vmatprep.subr.mxu0 0.0
    %1358 = vmatpush1.msra.mxu0 0.0
    %1359 = vmatprep.subr.mxu0 0.0
    %1360 = vmatpush1.msra.mxu0 0.0
    %1361 = vmatprep.subr.mxu0 0.0
    %1362 = vmatpush1.msra.mxu0 0.0
    %1363 = vmatprep.subr.mxu0 0.0
    %1364 = vmatpush1.msra.mxu0 0.0
    %1365 = vmatprep.subr.mxu0 0.0
    %1366 = vmatpush1.msra.mxu0 0.0
    %1367 = vmatprep.subr.mxu0 0.0
    %1368 = vmatpush1.msra.mxu0 0.0
    %1369 = vmatprep.subr.mxu0 0.0
    %1370 = vmatpush1.msra.mxu0 0.0
    %1371 = vmatprep.subr.mxu0 0.0
    %1372 = vmatpush1.msra.mxu0 0.0
    %1373 = vmatprep.subr.mxu0 0.0
    %1374 = vmatpush1.msra.mxu0 %v47
    %1375 = vmatprep.subr.mxu0 0.0
    %1376 = vmatpush1.msra.mxu0 %v46
    %1377 = vmatprep.subr.mxu0 0.0
    %1378 = vmatpush1.msra.mxu0 %v45
    %1379 = vmatprep.subr.mxu0 0.0
    %1380 = vmatpush1.msra.mxu0 %v44
    %1381 = vmatprep.subr.mxu0 0.0
    %1382 = vmatpush2.msra.mxu0 0.0
    %1383 = vmatprep.subr.mxu0 0.0
    %1384 = vmatpush2.msra.mxu0 0.0
    %1385 = vmatprep.subr.mxu0 0.0
    %1386 = vmatpush2.msra.mxu0 0.0
    %1387 = vmatprep.subr.mxu0 0.0
    %1388 = vmatpush2.msra.mxu0 0.0
    %1389 = vmatprep.subr.mxu0 0.0
    %1390 = vmatpush2.msra.mxu0 0.0
    %1391 = vmatprep.subr.mxu0 0.0
    %1392 = vmatpush2.msra.mxu0 0.0
    %1393 = vmatprep.subr.mxu0 0.0
    %1394 = vmatpush2.msra.mxu0 0.0
    %1395 = vmatprep.subr.mxu0 0.0
    %1396 = vmatpush2.msra.mxu0 0.0
    %1397 = vmatprep.subr.mxu0 0.0
    %1398 = vmatpush2.msra.mxu0 0.0
    %1399 = vmatprep.subr.mxu0 0.0
    %1400 = vmatpush2.msra.mxu0 0.0
    %1401 = vmatprep.subr.mxu0 0.0
    %1402 = vmatpush2.msra.mxu0 0.0
    %1403 = vmatprep.subr.mxu0 0.0
    %1404 = vmatpush2.msra.mxu0 0.0
    %1405 = vmatprep.subr.mxu0 0.0
    %1406 = vmatpush2.msra.mxu0 0.0
    %1407 = vmatprep.subr.mxu0 0.0
    %1408 = vmatpush2.msra.mxu0 0.0
    %1409 = vmatprep.subr.mxu0 0.0
    %1410 = vmatpush2.msra.mxu0 0.0
    %1411 = vmatprep.subr.mxu0 0.0
    %1412 = vmatpush2.msra.mxu0 0.0
    %1413 = vmatprep.mubr.f32.mxu0 0.0
    %1414 = vmatmul.mubr.f32.gmra.mxu0 %v1347
    %v1415 = vpop.f32.mrf.mxu0
    %v1416 = vadd.f32 0.0, %v1415
    %v1417 = vpop.f32.mrf.mxu0
    %1418 = vdwg.mxu0
    %v1419 = vadd.f32 %v1343, %v1416
    %v1420 = vxor.u32 %v1419, 2147483648
    %v1421 = vmul.f32 %v1420, 1.442695
    %v1422 = vpow.pop %v1421
    %v1423 = vadd.f32 %v1422, 1.0
    %v1424 = vrcp.pop %v1423
    %v1425 = vmul.f32 1.0, %v1424
    %v1426 = vtanh.pop %v1419
    %v1427 = vmul.f32 %v1425, %v1160
    %1429 = vrot.lane.b32.xlu0 %v1426, 64
    %v1430 = vpop.permute.xlu0 %1429
    %v1432 = vmul.f32 %v1425, %v1430
    %1434 = vrot.lane.b32.xlu0 %v1432, 32
    %v1435 = vpop.permute.xlu0 %1434
    %v1437 = vadd.f32 %v1427, %v1435
    %v1438 = vtanh.pop %v1437
    %1440 = vrot.lane.b32.xlu0 %v1438, 64
    %v1441 = vpop.permute.xlu0 %1440
    %v1443 = vmul.f32 %v1425, %v1441
    %v1445 = vsel %vm55, %v1342, 0
    %1447 = vmatprep.subr.mxu0 0.0
    %1448 = vmatpush1.msra.mxu0 0.0
    %1449 = vmatprep.subr.mxu0 0.0
    %1450 = vmatpush1.msra.mxu0 0.0
    %1451 = vmatprep.subr.mxu0 0.0
    %1452 = vmatpush1.msra.mxu0 0.0
    %1453 = vmatprep.subr.mxu0 0.0
    %1454 = vmatpush1.msra.mxu0 0.0
    %1455 = vmatprep.subr.mxu0 0.0
    %1456 = vmatpush1.msra.mxu0 0.0
    %1457 = vmatprep.subr.mxu0 0.0
    %1458 = vmatpush1.msra.mxu0 0.0
    %1459 = vmatprep.subr.mxu0 0.0
    %1460 = vmatpush1.msra.mxu0 0.0
    %1461 = vmatprep.subr.mxu0 0.0
    %1462 = vmatpush1.msra.mxu0 0.0
    %1463 = vmatprep.subr.mxu0 0.0
    %1464 = vmatpush1.msra.mxu0 0.0
    %1465 = vmatprep.subr.mxu0 0.0
    %1466 = vmatpush1.msra.mxu0 0.0
    %1467 = vmatprep.subr.mxu0 0.0
    %1468 = vmatpush1.msra.mxu0 0.0
    %1469 = vmatprep.subr.mxu0 0.0
    %1470 = vmatpush1.msra.mxu0 0.0
    %1471 = vmatprep.subr.mxu0 0.0
    %1472 = vmatpush1.msra.mxu0 %v33
    %1473 = vmatprep.subr.mxu0 0.0
    %1474 = vmatpush1.msra.mxu0 %v32
    %1475 = vmatprep.subr.mxu0 0.0
    %1476 = vmatpush1.msra.mxu0 %v31
    %1477 = vmatprep.subr.mxu0 0.0
    %1478 = vmatpush1.msra.mxu0 %v30
    %1479 = vmatprep.subr.mxu0 0.0
    %1480 = vmatpush2.msra.mxu0 0.0
    %1481 = vmatprep.subr.mxu0 0.0
    %1482 = vmatpush2.msra.mxu0 0.0
    %1483 = vmatprep.subr.mxu0 0.0
    %1484 = vmatpush2.msra.mxu0 0.0
    %1485 = vmatprep.subr.mxu0 0.0
    %1486 = vmatpush2.msra.mxu0 0.0
    %1487 = vmatprep.subr.mxu0 0.0
    %1488 = vmatpush2.msra.mxu0 0.0
    %1489 = vmatprep.subr.mxu0 0.0
    %1490 = vmatpush2.msra.mxu0 0.0
    %1491 = vmatprep.subr.mxu0 0.0
    %1492 = vmatpush2.msra.mxu0 0.0
    %1493 = vmatprep.subr.mxu0 0.0
    %1494 = vmatpush2.msra.mxu0 0.0
    %1495 = vmatprep.subr.mxu0 0.0
    %1496 = vmatpush2.msra.mxu0 0.0
    %1497 = vmatprep.subr.mxu0 0.0
    %1498 = vmatpush2.msra.mxu0 0.0
    %1499 = vmatprep.subr.mxu0 0.0
    %1500 = vmatpush2.msra.mxu0 0.0
    %1501 = vmatprep.subr.mxu0 0.0
    %1502 = vmatpush2.msra.mxu0 0.0
    %1503 = vmatprep.subr.mxu0 0.0
    %1504 = vmatpush2.msra.mxu0 0.0
    %1505 = vmatprep.subr.mxu0 0.0
    %1506 = vmatpush2.msra.mxu0 0.0
    %1507 = vmatprep.subr.mxu0 0.0
    %1508 = vmatpush2.msra.mxu0 0.0
    %1509 = vmatprep.subr.mxu0 0.0
    %1510 = vmatpush2.msra.mxu0 0.0
    %1511 = vmatprep.mubr.f32.mxu0 0.0
    %1512 = vmatmul.mubr.f32.gmra.mxu0 %v1445
    %v1513 = vpop.f32.mrf.mxu0
    %v1514 = vadd.f32 %v53, %v1513
    %v1515 = vpop.f32.mrf.mxu0
    %1516 = vdwg.mxu0
    %v1517 = vadd.f32 %v1514, %v1337
    %v1518 = vxor.u32 %v1517, 2147483648
    %v1519 = vmul.f32 %v1518, 1.442695
    %v1520 = vpow.pop %v1519
    %v1521 = vadd.f32 %v1520, 1.0
    %v1522 = vrcp.pop %v1521
    %v1523 = vmul.f32 1.0, %v1522
    %v1524 = vtanh.pop %v1517
    %v1525 = vmul.f32 %v1523, %v1258
    %1527 = vrot.lane.b32.xlu0 %v1524, 64
    %v1528 = vpop.permute.xlu0 %1527
    %v1530 = vmul.f32 %v1523, %v1528
    %1532 = vrot.lane.b32.xlu0 %v1530, 32
    %v1533 = vpop.permute.xlu0 %1532
    %v1535 = vadd.f32 %v1525, %v1533
    %v1536 = vtanh.pop %v1535
    %1538 = vrot.lane.b32.xlu0 %v1536, 64
    %v1539 = vpop.permute.xlu0 %1538
    %v1541 = vmul.f32 %v1523, %v1539
    %1543 = vrot.lane.b32.xlu0 %v1541, 32
    %v1544 = vpop.permute.xlu0 %1543
    %v1545 = vsel %vm55, %v1544, 0
    %1547 = vmatprep.subr.mxu0 0.0
    %1548 = vmatpush1.msra.mxu0 0.0
    %1549 = vmatprep.subr.mxu0 0.0
    %1550 = vmatpush1.msra.mxu0 0.0
    %1551 = vmatprep.subr.mxu0 0.0
    %1552 = vmatpush1.msra.mxu0 0.0
    %1553 = vmatprep.subr.mxu0 0.0
    %1554 = vmatpush1.msra.mxu0 0.0
    %1555 = vmatprep.subr.mxu0 0.0
    %1556 = vmatpush1.msra.mxu0 0.0
    %1557 = vmatprep.subr.mxu0 0.0
    %1558 = vmatpush1.msra.mxu0 0.0
    %1559 = vmatprep.subr.mxu0 0.0
    %1560 = vmatpush1.msra.mxu0 0.0
    %1561 = vmatprep.subr.mxu0 0.0
    %1562 = vmatpush1.msra.mxu0 0.0
    %1563 = vmatprep.subr.mxu0 0.0
    %1564 = vmatpush1.msra.mxu0 0.0
    %1565 = vmatprep.subr.mxu0 0.0
    %1566 = vmatpush1.msra.mxu0 0.0
    %1567 = vmatprep.subr.mxu0 0.0
    %1568 = vmatpush1.msra.mxu0 0.0
    %1569 = vmatprep.subr.mxu0 0.0
    %1570 = vmatpush1.msra.mxu0 0.0
    %1571 = vmatprep.subr.mxu0 %v42
    %1572 = vmatpush1.msra.mxu0 %v41
    %1573 = vmatprep.subr.mxu0 %v40
    %1574 = vmatpush1.msra.mxu0 %v39
    %1575 = vmatprep.subr.mxu0 %v38
    %1576 = vmatpush1.msra.mxu0 %v37
    %1577 = vmatprep.subr.mxu0 %v36
    %1578 = vmatpush1.msra.mxu0 %v35
    %1579 = vmatprep.subr.mxu0 0.0
    %1580 = vmatpush2.msra.mxu0 0.0
    %1581 = vmatprep.subr.mxu0 0.0
    %1582 = vmatpush2.msra.mxu0 0.0
    %1583 = vmatprep.subr.mxu0 0.0
    %1584 = vmatpush2.msra.mxu0 0.0
    %1585 = vmatprep.subr.mxu0 0.0
    %1586 = vmatpush2.msra.mxu0 0.0
    %1587 = vmatprep.subr.mxu0 0.0
    %1588 = vmatpush2.msra.mxu0 0.0
    %1589 = vmatprep.subr.mxu0 0.0
    %1590 = vmatpush2.msra.mxu0 0.0
    %1591 = vmatprep.subr.mxu0 0.0
    %1592 = vmatpush2.msra.mxu0 0.0
    %1593 = vmatprep.subr.mxu0 0.0
    %1594 = vmatpush2.msra.mxu0 0.0
    %1595 = vmatprep.subr.mxu0 0.0
    %1596 = vmatpush2.msra.mxu0 0.0
    %1597 = vmatprep.subr.mxu0 0.0
    %1598 = vmatpush2.msra.mxu0 0.0
    %1599 = vmatprep.subr.mxu0 0.0
    %1600 = vmatpush2.msra.mxu0 0.0
    %1601 = vmatprep.subr.mxu0 0.0
    %1602 = vmatpush2.msra.mxu0 0.0
    %1603 = vmatprep.subr.mxu0 0.0
    %1604 = vmatpush2.msra.mxu0 0.0
    %1605 = vmatprep.subr.mxu0 0.0
    %1606 = vmatpush2.msra.mxu0 0.0
    %1607 = vmatprep.subr.mxu0 0.0
    %1608 = vmatpush2.msra.mxu0 0.0
    %1609 = vmatprep.subr.mxu0 0.0
    %1610 = vmatpush2.msra.mxu0 0.0
    %1611 = vmatprep.mubr.f32.mxu0 0.0
    %1612 = vmatmul.mubr.f32.gmra.mxu0 %v1545
    %v1613 = vpop.f32.mrf.mxu0
    %v1614 = vadd.f32 0.0, %v1613
    %v1615 = vpop.f32.mrf.mxu0
    %v1616 = vadd.f32 0.0, %v1615
    %1617 = vdwg.mxu0
    %s1618 = scalar_lea.vmem %s0, 12
    %v1619 = vld [vmem:[%s1618] sm:$0x3]
    %v1620 = vadd.f32 %v1616, %v235
    %1622 = vrot.lane.b32.xlu0 %v1443, 32
    %v1623 = vpop.permute.xlu0 %1622
    %v1624 = vsel %vm55, %v1623, 0
    %1626 = vmatprep.subr.mxu0 0.0
    %1627 = vmatpush1.msra.mxu0 0.0
    %1628 = vmatprep.subr.mxu0 0.0
    %1629 = vmatpush1.msra.mxu0 0.0
    %1630 = vmatprep.subr.mxu0 0.0
    %1631 = vmatpush1.msra.mxu0 0.0
    %1632 = vmatprep.subr.mxu0 0.0
    %1633 = vmatpush1.msra.mxu0 0.0
    %1634 = vmatprep.subr.mxu0 0.0
    %1635 = vmatpush1.msra.mxu0 0.0
    %1636 = vmatprep.subr.mxu0 0.0
    %1637 = vmatpush1.msra.mxu0 0.0
    %1638 = vmatprep.subr.mxu0 0.0
    %1639 = vmatpush1.msra.mxu0 0.0
    %1640 = vmatprep.subr.mxu0 0.0
    %1641 = vmatpush1.msra.mxu0 0.0
    %1642 = vmatprep.subr.mxu0 0.0
    %1643 = vmatpush1.msra.mxu0 0.0
    %1644 = vmatprep.subr.mxu0 0.0
    %1645 = vmatpush1.msra.mxu0 0.0
    %1646 = vmatprep.subr.mxu0 0.0
    %1647 = vmatpush1.msra.mxu0 0.0
    %1648 = vmatprep.subr.mxu0 0.0
    %1649 = vmatpush1.msra.mxu0 0.0
    %1650 = vmatprep.subr.mxu0 0.0
    %1651 = vmatpush1.msra.mxu0 %v47
    %1652 = vmatprep.subr.mxu0 0.0
    %1653 = vmatpush1.msra.mxu0 %v46
    %1654 = vmatprep.subr.mxu0 0.0
    %1655 = vmatpush1.msra.mxu0 %v45
    %1656 = vmatprep.subr.mxu0 0.0
    %1657 = vmatpush1.msra.mxu0 %v44
    %1658 = vmatprep.subr.mxu0 0.0
    %1659 = vmatpush2.msra.mxu0 0.0
    %1660 = vmatprep.subr.mxu0 0.0
    %1661 = vmatpush2.msra.mxu0 0.0
    %1662 = vmatprep.subr.mxu0 0.0
    %1663 = vmatpush2.msra.mxu0 0.0
    %1664 = vmatprep.subr.mxu0 0.0
    %1665 = vmatpush2.msra.mxu0 0.0
    %1666 = vmatprep.subr.mxu0 0.0
    %1667 = vmatpush2.msra.mxu0 0.0
    %1668 = vmatprep.subr.mxu0 0.0
    %1669 = vmatpush2.msra.mxu0 0.0
    %1670 = vmatprep.subr.mxu0 0.0
    %1671 = vmatpush2.msra.mxu0 0.0
    %1672 = vmatprep.subr.mxu0 0.0
    %1673 = vmatpush2.msra.mxu0 0.0
    %1674 = vmatprep.subr.mxu0 0.0
    %1675 = vmatpush2.msra.mxu0 0.0
    %1676 = vmatprep.subr.mxu0 0.0
    %1677 = vmatpush2.msra.mxu0 0.0
    %1678 = vmatprep.subr.mxu0 0.0
    %1679 = vmatpush2.msra.mxu0 0.0
    %1680 = vmatprep.subr.mxu0 0.0
    %1681 = vmatpush2.msra.mxu0 0.0
    %1682 = vmatprep.subr.mxu0 0.0
    %1683 = vmatpush2.msra.mxu0 0.0
    %1684 = vmatprep.subr.mxu0 0.0
    %1685 = vmatpush2.msra.mxu0 0.0
    %1686 = vmatprep.subr.mxu0 0.0
    %1687 = vmatpush2.msra.mxu0 0.0
    %1688 = vmatprep.subr.mxu0 0.0
    %1689 = vmatpush2.msra.mxu0 0.0
    %1690 = vmatprep.mubr.f32.mxu0 0.0
    %1691 = vmatmul.mubr.f32.gmra.mxu0 %v1624
    %v1692 = vpop.f32.mrf.mxu0
    %v1693 = vadd.f32 0.0, %v1692
    %v1694 = vpop.f32.mrf.mxu0
    %1695 = vdwg.mxu0
    %v1696 = vadd.f32 %v1620, %v1693
    %v1697 = vxor.u32 %v1696, 2147483648
    %v1698 = vmul.f32 %v1697, 1.442695
    %v1699 = vpow.pop %v1698
    %v1700 = vadd.f32 %v1699, 1.0
    %v1701 = vrcp.pop %v1700
    %v1702 = vmul.f32 1.0, %v1701
    %v1703 = vtanh.pop %v1696
    %v1704 = vmul.f32 %v1702, %v1437
    %1706 = vrot.lane.b32.xlu0 %v1703, 64
    %v1707 = vpop.permute.xlu0 %1706
    %v1709 = vmul.f32 %v1702, %v1707
    %1711 = vrot.lane.b32.xlu0 %v1709, 32
    %v1712 = vpop.permute.xlu0 %1711
    %v1714 = vadd.f32 %v1704, %v1712
    %v1715 = vtanh.pop %v1714
    %1717 = vrot.lane.b32.xlu0 %v1715, 64
    %v1718 = vpop.permute.xlu0 %1717
    %v1720 = vmul.f32 %v1702, %v1718
    %v1722 = vsel %vm55, %v1619, 0
    %1724 = vmatprep.subr.mxu0 0.0
    %1725 = vmatpush1.msra.mxu0 0.0
    %1726 = vmatprep.subr.mxu0 0.0
    %1727 = vmatpush1.msra.mxu0 0.0
    %1728 = vmatprep.subr.mxu0 0.0
    %1729 = vmatpush1.msra.mxu0 0.0
    %1730 = vmatprep.subr.mxu0 0.0
    %1731 = vmatpush1.msra.mxu0 0.0
    %1732 = vmatprep.subr.mxu0 0.0
    %1733 = vmatpush1.msra.mxu0 0.0
    %1734 = vmatprep.subr.mxu0 0.0
    %1735 = vmatpush1.msra.mxu0 0.0
    %1736 = vmatprep.subr.mxu0 0.0
    %1737 = vmatpush1.msra.mxu0 0.0
    %1738 = vmatprep.subr.mxu0 0.0
    %1739 = vmatpush1.msra.mxu0 0.0
    %1740 = vmatprep.subr.mxu0 0.0
    %1741 = vmatpush1.msra.mxu0 0.0
    %1742 = vmatprep.subr.mxu0 0.0
    %1743 = vmatpush1.msra.mxu0 0.0
    %1744 = vmatprep.subr.mxu0 0.0
    %1745 = vmatpush1.msra.mxu0 0.0
    %1746 = vmatprep.subr.mxu0 0.0
    %1747 = vmatpush1.msra.mxu0 0.0
    %1748 = vmatprep.subr.mxu0 0.0
    %1749 = vmatpush1.msra.mxu0 %v33
    %1750 = vmatprep.subr.mxu0 0.0
    %1751 = vmatpush1.msra.mxu0 %v32
    %1752 = vmatprep.subr.mxu0 0.0
    %1753 = vmatpush1.msra.mxu0 %v31
    %1754 = vmatprep.subr.mxu0 0.0
    %1755 = vmatpush1.msra.mxu0 %v30
    %1756 = vmatprep.subr.mxu0 0.0
    %1757 = vmatpush2.msra.mxu0 0.0
    %1758 = vmatprep.subr.mxu0 0.0
    %1759 = vmatpush2.msra.mxu0 0.0
    %1760 = vmatprep.subr.mxu0 0.0
    %1761 = vmatpush2.msra.mxu0 0.0
    %1762 = vmatprep.subr.mxu0 0.0
    %1763 = vmatpush2.msra.mxu0 0.0
    %1764 = vmatprep.subr.mxu0 0.0
    %1765 = vmatpush2.msra.mxu0 0.0
    %1766 = vmatprep.subr.mxu0 0.0
    %1767 = vmatpush2.msra.mxu0 0.0
    %1768 = vmatprep.subr.mxu0 0.0
    %1769 = vmatpush2.msra.mxu0 0.0
    %1770 = vmatprep.subr.mxu0 0.0
    %1771 = vmatpush2.msra.mxu0 0.0
    %1772 = vmatprep.subr.mxu0 0.0
    %1773 = vmatpush2.msra.mxu0 0.0
    %1774 = vmatprep.subr.mxu0 0.0
    %1775 = vmatpush2.msra.mxu0 0.0
    %1776 = vmatprep.subr.mxu0 0.0
    %1777 = vmatpush2.msra.mxu0 0.0
    %1778 = vmatprep.subr.mxu0 0.0
    %1779 = vmatpush2.msra.mxu0 0.0
    %1780 = vmatprep.subr.mxu0 0.0
    %1781 = vmatpush2.msra.mxu0 0.0
    %1782 = vmatprep.subr.mxu0 0.0
    %1783 = vmatpush2.msra.mxu0 0.0
    %1784 = vmatprep.subr.mxu0 0.0
    %1785 = vmatpush2.msra.mxu0 0.0
    %1786 = vmatprep.subr.mxu0 0.0
    %1787 = vmatpush2.msra.mxu0 0.0
    %1788 = vmatprep.mubr.f32.mxu0 0.0
    %1789 = vmatmul.mubr.f32.gmra.mxu0 %v1722
    %v1790 = vpop.f32.mrf.mxu0
    %v1791 = vadd.f32 %v53, %v1790
    %v1792 = vpop.f32.mrf.mxu0
    %1793 = vdwg.mxu0
    %v1794 = vadd.f32 %v1791, %v1614
    %v1795 = vxor.u32 %v1794, 2147483648
    %v1796 = vmul.f32 %v1795, 1.442695
    %v1797 = vpow.pop %v1796
    %v1798 = vadd.f32 %v1797, 1.0
    %v1799 = vrcp.pop %v1798
    %v1800 = vmul.f32 1.0, %v1799
    %v1801 = vtanh.pop %v1794
    %v1802 = vmul.f32 %v1800, %v1535
    %1804 = vrot.lane.b32.xlu0 %v1801, 64
    %v1805 = vpop.permute.xlu0 %1804
    %v1807 = vmul.f32 %v1800, %v1805
    %1809 = vrot.lane.b32.xlu0 %v1807, 32
    %v1810 = vpop.permute.xlu0 %1809
    %v1812 = vadd.f32 %v1802, %v1810
    %v1813 = vtanh.pop %v1812
    %1815 = vrot.lane.b32.xlu0 %v1813, 64
    %v1816 = vpop.permute.xlu0 %1815
    %v1818 = vmul.f32 %v1800, %v1816
    %1820 = vrot.lane.b32.xlu0 %v1818, 32
    %v1821 = vpop.permute.xlu0 %1820
    %v1822 = vsel %vm55, %v1821, 0
    %1824 = vmatprep.subr.mxu0 0.0
    %1825 = vmatpush1.msra.mxu0 0.0
    %1826 = vmatprep.subr.mxu0 0.0
    %1827 = vmatpush1.msra.mxu0 0.0
    %1828 = vmatprep.subr.mxu0 0.0
    %1829 = vmatpush1.msra.mxu0 0.0
    %1830 = vmatprep.subr.mxu0 0.0
    %1831 = vmatpush1.msra.mxu0 0.0
    %1832 = vmatprep.subr.mxu0 0.0
    %1833 = vmatpush1.msra.mxu0 0.0
    %1834 = vmatprep.subr.mxu0 0.0
    %1835 = vmatpush1.msra.mxu0 0.0
    %1836 = vmatprep.subr.mxu0 0.0
    %1837 = vmatpush1.msra.mxu0 0.0
    %1838 = vmatprep.subr.mxu0 0.0
    %1839 = vmatpush1.msra.mxu0 0.0
    %1840 = vmatprep.subr.mxu0 0.0
    %1841 = vmatpush1.msra.mxu0 0.0
    %1842 = vmatprep.subr.mxu0 0.0
    %1843 = vmatpush1.msra.mxu0 0.0
    %1844 = vmatprep.subr.mxu0 0.0
    %1845 = vmatpush1.msra.mxu0 0.0
    %1846 = vmatprep.subr.mxu0 0.0
    %1847 = vmatpush1.msra.mxu0 0.0
    %1848 = vmatprep.subr.mxu0 %v42
    %1849 = vmatpush1.msra.mxu0 %v41
    %1850 = vmatprep.subr.mxu0 %v40
    %1851 = vmatpush1.msra.mxu0 %v39
    %1852 = vmatprep.subr.mxu0 %v38
    %1853 = vmatpush1.msra.mxu0 %v37
    %1854 = vmatprep.subr.mxu0 %v36
    %1855 = vmatpush1.msra.mxu0 %v35
    %1856 = vmatprep.subr.mxu0 0.0
    %1857 = vmatpush2.msra.mxu0 0.0
    %1858 = vmatprep.subr.mxu0 0.0
    %1859 = vmatpush2.msra.mxu0 0.0
    %1860 = vmatprep.subr.mxu0 0.0
    %1861 = vmatpush2.msra.mxu0 0.0
    %1862 = vmatprep.subr.mxu0 0.0
    %1863 = vmatpush2.msra.mxu0 0.0
    %1864 = vmatprep.subr.mxu0 0.0
    %1865 = vmatpush2.msra.mxu0 0.0
    %1866 = vmatprep.subr.mxu0 0.0
    %1867 = vmatpush2.msra.mxu0 0.0
    %1868 = vmatprep.subr.mxu0 0.0
    %1869 = vmatpush2.msra.mxu0 0.0
    %1870 = vmatprep.subr.mxu0 0.0
    %1871 = vmatpush2.msra.mxu0 0.0
    %1872 = vmatprep.subr.mxu0 0.0
    %1873 = vmatpush2.msra.mxu0 0.0
    %1874 = vmatprep.subr.mxu0 0.0
    %1875 = vmatpush2.msra.mxu0 0.0
    %1876 = vmatprep.subr.mxu0 0.0
    %1877 = vmatpush2.msra.mxu0 0.0
    %1878 = vmatprep.subr.mxu0 0.0
    %1879 = vmatpush2.msra.mxu0 0.0
    %1880 = vmatprep.subr.mxu0 0.0
    %1881 = vmatpush2.msra.mxu0 0.0
    %1882 = vmatprep.subr.mxu0 0.0
    %1883 = vmatpush2.msra.mxu0 0.0
    %1884 = vmatprep.subr.mxu0 0.0
    %1885 = vmatpush2.msra.mxu0 0.0
    %1886 = vmatprep.subr.mxu0 0.0
    %1887 = vmatpush2.msra.mxu0 0.0
    %1888 = vmatprep.mubr.f32.mxu0 0.0
    %1889 = vmatmul.mubr.f32.gmra.mxu0 %v1822
    %v1890 = vpop.f32.mrf.mxu0
    %v1891 = vadd.f32 0.0, %v1890
    %v1892 = vpop.f32.mrf.mxu0
    %v1893 = vadd.f32 0.0, %v1892
    %1894 = vdwg.mxu0
    %s1895 = scalar_lea.vmem %s0, 14
    %v1896 = vld [vmem:[%s1895] sm:$0x3]
    %v1897 = vadd.f32 %v1893, %v235
    %1899 = vrot.lane.b32.xlu0 %v1720, 32
    %v1900 = vpop.permute.xlu0 %1899
    %v1901 = vsel %vm55, %v1900, 0
    %1903 = vmatprep.subr.mxu0 0.0
    %1904 = vmatpush1.msra.mxu0 0.0
    %1905 = vmatprep.subr.mxu0 0.0
    %1906 = vmatpush1.msra.mxu0 0.0
    %1907 = vmatprep.subr.mxu0 0.0
    %1908 = vmatpush1.msra.mxu0 0.0
    %1909 = vmatprep.subr.mxu0 0.0
    %1910 = vmatpush1.msra.mxu0 0.0
    %1911 = vmatprep.subr.mxu0 0.0
    %1912 = vmatpush1.msra.mxu0 0.0
    %1913 = vmatprep.subr.mxu0 0.0
    %1914 = vmatpush1.msra.mxu0 0.0
    %1915 = vmatprep.subr.mxu0 0.0
    %1916 = vmatpush1.msra.mxu0 0.0
    %1917 = vmatprep.subr.mxu0 0.0
    %1918 = vmatpush1.msra.mxu0 0.0
    %1919 = vmatprep.subr.mxu0 0.0
    %1920 = vmatpush1.msra.mxu0 0.0
    %1921 = vmatprep.subr.mxu0 0.0
    %1922 = vmatpush1.msra.mxu0 0.0
    %1923 = vmatprep.subr.mxu0 0.0
    %1924 = vmatpush1.msra.mxu0 0.0
    %1925 = vmatprep.subr.mxu0 0.0
    %1926 = vmatpush1.msra.mxu0 0.0
    %1927 = vmatprep.subr.mxu0 0.0
    %1928 = vmatpush1.msra.mxu0 %v47
    %1929 = vmatprep.subr.mxu0 0.0
    %1930 = vmatpush1.msra.mxu0 %v46
    %1931 = vmatprep.subr.mxu0 0.0
    %1932 = vmatpush1.msra.mxu0 %v45
    %1933 = vmatprep.subr.mxu0 0.0
    %1934 = vmatpush1.msra.mxu0 %v44
    %1935 = vmatprep.subr.mxu0 0.0
    %1936 = vmatpush2.msra.mxu0 0.0
    %1937 = vmatprep.subr.mxu0 0.0
    %1938 = vmatpush2.msra.mxu0 0.0
    %1939 = vmatprep.subr.mxu0 0.0
    %1940 = vmatpush2.msra.mxu0 0.0
    %1941 = vmatprep.subr.mxu0 0.0
    %1942 = vmatpush2.msra.mxu0 0.0
    %1943 = vmatprep.subr.mxu0 0.0
    %1944 = vmatpush2.msra.mxu0 0.0
    %1945 = vmatprep.subr.mxu0 0.0
    %1946 = vmatpush2.msra.mxu0 0.0
    %1947 = vmatprep.subr.mxu0 0.0
    %1948 = vmatpush2.msra.mxu0 0.0
    %1949 = vmatprep.subr.mxu0 0.0
    %1950 = vmatpush2.msra.mxu0 0.0
    %1951 = vmatprep.subr.mxu0 0.0
    %1952 = vmatpush2.msra.mxu0 0.0
    %1953 = vmatprep.subr.mxu0 0.0
    %1954 = vmatpush2.msra.mxu0 0.0
    %1955 = vmatprep.subr.mxu0 0.0
    %1956 = vmatpush2.msra.mxu0 0.0
    %1957 = vmatprep.subr.mxu0 0.0
    %1958 = vmatpush2.msra.mxu0 0.0
    %1959 = vmatprep.subr.mxu0 0.0
    %1960 = vmatpush2.msra.mxu0 0.0
    %1961 = vmatprep.subr.mxu0 0.0
    %1962 = vmatpush2.msra.mxu0 0.0
    %1963 = vmatprep.subr.mxu0 0.0
    %1964 = vmatpush2.msra.mxu0 0.0
    %1965 = vmatprep.subr.mxu0 0.0
    %1966 = vmatpush2.msra.mxu0 0.0
    %1967 = vmatprep.mubr.f32.mxu0 0.0
    %1968 = vmatmul.mubr.f32.gmra.mxu0 %v1901
    %v1969 = vpop.f32.mrf.mxu0
    %v1970 = vadd.f32 0.0, %v1969
    %v1971 = vpop.f32.mrf.mxu0
    %1972 = vdwg.mxu0
    %v1973 = vadd.f32 %v1897, %v1970
    %v1974 = vxor.u32 %v1973, 2147483648
    %v1975 = vmul.f32 %v1974, 1.442695
    %v1976 = vpow.pop %v1975
    %v1977 = vadd.f32 %v1976, 1.0
    %v1978 = vrcp.pop %v1977
    %v1979 = vmul.f32 1.0, %v1978
    %v1980 = vtanh.pop %v1973
    %v1981 = vmul.f32 %v1979, %v1714
    %1983 = vrot.lane.b32.xlu0 %v1980, 64
    %v1984 = vpop.permute.xlu0 %1983
    %v1986 = vmul.f32 %v1979, %v1984
    %1988 = vrot.lane.b32.xlu0 %v1986, 32
    %v1989 = vpop.permute.xlu0 %1988
    %v1991 = vadd.f32 %v1981, %v1989
    %v1992 = vtanh.pop %v1991
    %1994 = vrot.lane.b32.xlu0 %v1992, 64
    %v1995 = vpop.permute.xlu0 %1994
    %v1997 = vmul.f32 %v1979, %v1995
    %v1999 = vsel %vm55, %v1896, 0
    %2001 = vmatprep.subr.mxu0 0.0
    %2002 = vmatpush1.msra.mxu0 0.0
    %2003 = vmatprep.subr.mxu0 0.0
    %2004 = vmatpush1.msra.mxu0 0.0
    %2005 = vmatprep.subr.mxu0 0.0
    %2006 = vmatpush1.msra.mxu0 0.0
    %2007 = vmatprep.subr.mxu0 0.0
    %2008 = vmatpush1.msra.mxu0 0.0
    %2009 = vmatprep.subr.mxu0 0.0
    %2010 = vmatpush1.msra.mxu0 0.0
    %2011 = vmatprep.subr.mxu0 0.0
    %2012 = vmatpush1.msra.mxu0 0.0
    %2013 = vmatprep.subr.mxu0 0.0
    %2014 = vmatpush1.msra.mxu0 0.0
    %2015 = vmatprep.subr.mxu0 0.0
    %2016 = vmatpush1.msra.mxu0 0.0
    %2017 = vmatprep.subr.mxu0 0.0
    %2018 = vmatpush1.msra.mxu0 0.0
    %2019 = vmatprep.subr.mxu0 0.0
    %2020 = vmatpush1.msra.mxu0 0.0
    %2021 = vmatprep.subr.mxu0 0.0
    %2022 = vmatpush1.msra.mxu0 0.0
    %2023 = vmatprep.subr.mxu0 0.0
    %2024 = vmatpush1.msra.mxu0 0.0
    %2025 = vmatprep.subr.mxu0 0.0
    %2026 = vmatpush1.msra.mxu0 %v33
    %2027 = vmatprep.subr.mxu0 0.0
    %2028 = vmatpush1.msra.mxu0 %v32
    %2029 = vmatprep.subr.mxu0 0.0
    %2030 = vmatpush1.msra.mxu0 %v31
    %2031 = vmatprep.subr.mxu0 0.0
    %2032 = vmatpush1.msra.mxu0 %v30
    %2033 = vmatprep.subr.mxu0 0.0
    %2034 = vmatpush2.msra.mxu0 0.0
    %2035 = vmatprep.subr.mxu0 0.0
    %2036 = vmatpush2.msra.mxu0 0.0
    %2037 = vmatprep.subr.mxu0 0.0
    %2038 = vmatpush2.msra.mxu0 0.0
    %2039 = vmatprep.subr.mxu0 0.0
    %2040 = vmatpush2.msra.mxu0 0.0
    %2041 = vmatprep.subr.mxu0 0.0
    %2042 = vmatpush2.msra.mxu0 0.0
    %2043 = vmatprep.subr.mxu0 0.0
    %2044 = vmatpush2.msra.mxu0 0.0
    %2045 = vmatprep.subr.mxu0 0.0
    %2046 = vmatpush2.msra.mxu0 0.0
    %2047 = vmatprep.subr.mxu0 0.0
    %2048 = vmatpush2.msra.mxu0 0.0
    %2049 = vmatprep.subr.mxu0 0.0
    %2050 = vmatpush2.msra.mxu0 0.0
    %2051 = vmatprep.subr.mxu0 0.0
    %2052 = vmatpush2.msra.mxu0 0.0
    %2053 = vmatprep.subr.mxu0 0.0
    %2054 = vmatpush2.msra.mxu0 0.0
    %2055 = vmatprep.subr.mxu0 0.0
    %2056 = vmatpush2.msra.mxu0 0.0
    %2057 = vmatprep.subr.mxu0 0.0
    %2058 = vmatpush2.msra.mxu0 0.0
    %2059 = vmatprep.subr.mxu0 0.0
    %2060 = vmatpush2.msra.mxu0 0.0
    %2061 = vmatprep.subr.mxu0 0.0
    %2062 = vmatpush2.msra.mxu0 0.0
    %2063 = vmatprep.subr.mxu0 0.0
    %2064 = vmatpush2.msra.mxu0 0.0
    %2065 = vmatprep.mubr.f32.mxu0 0.0
    %2066 = vmatmul.mubr.f32.gmra.mxu0 %v1999
    %v2067 = vpop.f32.mrf.mxu0
    %v2068 = vadd.f32 %v53, %v2067
    %v2069 = vpop.f32.mrf.mxu0
    %2070 = vdwg.mxu0
    %v2071 = vadd.f32 %v2068, %v1891
    %v2072 = vxor.u32 %v2071, 2147483648
    %v2073 = vmul.f32 %v2072, 1.442695
    %v2074 = vpow.pop %v2073
    %v2075 = vadd.f32 %v2074, 1.0
    %v2076 = vrcp.pop %v2075
    %v2077 = vmul.f32 1.0, %v2076
    %v2078 = vtanh.pop %v2071
    %v2079 = vmul.f32 %v2077, %v1812
    %2081 = vrot.lane.b32.xlu0 %v2078, 64
    %v2082 = vpop.permute.xlu0 %2081
    %v2084 = vmul.f32 %v2077, %v2082
    %2086 = vrot.lane.b32.xlu0 %v2084, 32
    %v2087 = vpop.permute.xlu0 %2086
    %v2089 = vadd.f32 %v2079, %v2087
    %v2090 = vtanh.pop %v2089
    %2092 = vrot.lane.b32.xlu0 %v2090, 64
    %v2093 = vpop.permute.xlu0 %2092
    %v2095 = vmul.f32 %v2077, %v2093
    %2097 = vrot.lane.b32.xlu0 %v2095, 32
    %v2098 = vpop.permute.xlu0 %2097
    %v2099 = vsel %vm55, %v2098, 0
    %2101 = vmatprep.subr.mxu0 0.0
    %2102 = vmatpush1.msra.mxu0 0.0
    %2103 = vmatprep.subr.mxu0 0.0
    %2104 = vmatpush1.msra.mxu0 0.0
    %2105 = vmatprep.subr.mxu0 0.0
    %2106 = vmatpush1.msra.mxu0 0.0
    %2107 = vmatprep.subr.mxu0 0.0
    %2108 = vmatpush1.msra.mxu0 0.0
    %2109 = vmatprep.subr.mxu0 0.0
    %2110 = vmatpush1.msra.mxu0 0.0
    %2111 = vmatprep.subr.mxu0 0.0
    %2112 = vmatpush1.msra.mxu0 0.0
    %2113 = vmatprep.subr.mxu0 0.0
    %2114 = vmatpush1.msra.mxu0 0.0
    %2115 = vmatprep.subr.mxu0 0.0
    %2116 = vmatpush1.msra.mxu0 0.0
    %2117 = vmatprep.subr.mxu0 0.0
    %2118 = vmatpush1.msra.mxu0 0.0
    %2119 = vmatprep.subr.mxu0 0.0
    %2120 = vmatpush1.msra.mxu0 0.0
    %2121 = vmatprep.subr.mxu0 0.0
    %2122 = vmatpush1.msra.mxu0 0.0
    %2123 = vmatprep.subr.mxu0 0.0
    %2124 = vmatpush1.msra.mxu0 0.0
    %2125 = vmatprep.subr.mxu0 %v42
    %2126 = vmatpush1.msra.mxu0 %v41
    %2127 = vmatprep.subr.mxu0 %v40
    %2128 = vmatpush1.msra.mxu0 %v39
    %2129 = vmatprep.subr.mxu0 %v38
    %2130 = vmatpush1.msra.mxu0 %v37
    %2131 = vmatprep.subr.mxu0 %v36
    %2132 = vmatpush1.msra.mxu0 %v35
    %2133 = vmatprep.subr.mxu0 0.0
    %2134 = vmatpush2.msra.mxu0 0.0
    %2135 = vmatprep.subr.mxu0 0.0
    %2136 = vmatpush2.msra.mxu0 0.0
    %2137 = vmatprep.subr.mxu0 0.0
    %2138 = vmatpush2.msra.mxu0 0.0
    %2139 = vmatprep.subr.mxu0 0.0
    %2140 = vmatpush2.msra.mxu0 0.0
    %2141 = vmatprep.subr.mxu0 0.0
    %2142 = vmatpush2.msra.mxu0 0.0
    %2143 = vmatprep.subr.mxu0 0.0
    %2144 = vmatpush2.msra.mxu0 0.0
    %2145 = vmatprep.subr.mxu0 0.0
    %2146 = vmatpush2.msra.mxu0 0.0
    %2147 = vmatprep.subr.mxu0 0.0
    %2148 = vmatpush2.msra.mxu0 0.0
    %2149 = vmatprep.subr.mxu0 0.0
    %2150 = vmatpush2.msra.mxu0 0.0
    %2151 = vmatprep.subr.mxu0 0.0
    %2152 = vmatpush2.msra.mxu0 0.0
    %2153 = vmatprep.subr.mxu0 0.0
    %2154 = vmatpush2.msra.mxu0 0.0
    %2155 = vmatprep.subr.mxu0 0.0
    %2156 = vmatpush2.msra.mxu0 0.0
    %2157 = vmatprep.subr.mxu0 0.0
    %2158 = vmatpush2.msra.mxu0 0.0
    %2159 = vmatprep.subr.mxu0 0.0
    %2160 = vmatpush2.msra.mxu0 0.0
    %2161 = vmatprep.subr.mxu0 0.0
    %2162 = vmatpush2.msra.mxu0 0.0
    %2163 = vmatprep.subr.mxu0 0.0
    %2164 = vmatpush2.msra.mxu0 0.0
    %2165 = vmatprep.mubr.f32.mxu0 0.0
    %2166 = vmatmul.mubr.f32.gmra.mxu0 %v2099
    %v2167 = vpop.f32.mrf.mxu0
    %v2168 = vpop.f32.mrf.mxu0
    %v2169 = vadd.f32 0.0, %v2168
    %2170 = vdwg.mxu0
    %v2171 = vadd.f32 %v2169, %v235
    %2173 = vrot.lane.b32.xlu0 %v1997, 32
    %v2174 = vpop.permute.xlu0 %2173
    %v2175 = vsel %vm55, %v2174, 0
    %2177 = vmatprep.subr.mxu0 0.0
    %2178 = vmatpush1.msra.mxu0 0.0
    %2179 = vmatprep.subr.mxu0 0.0
    %2180 = vmatpush1.msra.mxu0 0.0
    %2181 = vmatprep.subr.mxu0 0.0
    %2182 = vmatpush1.msra.mxu0 0.0
    %2183 = vmatprep.subr.mxu0 0.0
    %2184 = vmatpush1.msra.mxu0 0.0
    %2185 = vmatprep.subr.mxu0 0.0
    %2186 = vmatpush1.msra.mxu0 0.0
    %2187 = vmatprep.subr.mxu0 0.0
    %2188 = vmatpush1.msra.mxu0 0.0
    %2189 = vmatprep.subr.mxu0 0.0
    %2190 = vmatpush1.msra.mxu0 0.0
    %2191 = vmatprep.subr.mxu0 0.0
    %2192 = vmatpush1.msra.mxu0 0.0
    %2193 = vmatprep.subr.mxu0 0.0
    %2194 = vmatpush1.msra.mxu0 0.0
    %2195 = vmatprep.subr.mxu0 0.0
    %2196 = vmatpush1.msra.mxu0 0.0
    %2197 = vmatprep.subr.mxu0 0.0
    %2198 = vmatpush1.msra.mxu0 0.0
    %2199 = vmatprep.subr.mxu0 0.0
    %2200 = vmatpush1.msra.mxu0 0.0
    %2201 = vmatprep.subr.mxu0 0.0
    %2202 = vmatpush1.msra.mxu0 %v47
    %2203 = vmatprep.subr.mxu0 0.0
    %2204 = vmatpush1.msra.mxu0 %v46
    %2205 = vmatprep.subr.mxu0 0.0
    %2206 = vmatpush1.msra.mxu0 %v45
    %2207 = vmatprep.subr.mxu0 0.0
    %2208 = vmatpush1.msra.mxu0 %v44
    %2209 = vmatprep.subr.mxu0 0.0
    %2210 = vmatpush2.msra.mxu0 0.0
    %2211 = vmatprep.subr.mxu0 0.0
    %2212 = vmatpush2.msra.mxu0 0.0
    %2213 = vmatprep.subr.mxu0 0.0
    %2214 = vmatpush2.msra.mxu0 0.0
    %2215 = vmatprep.subr.mxu0 0.0
    %2216 = vmatpush2.msra.mxu0 0.0
    %2217 = vmatprep.subr.mxu0 0.0
    %2218 = vmatpush2.msra.mxu0 0.0
    %2219 = vmatprep.subr.mxu0 0.0
    %2220 = vmatpush2.msra.mxu0 0.0
    %2221 = vmatprep.subr.mxu0 0.0
    %2222 = vmatpush2.msra.mxu0 0.0
    %2223 = vmatprep.subr.mxu0 0.0
    %2224 = vmatpush2.msra.mxu0 0.0
    %2225 = vmatprep.subr.mxu0 0.0
    %2226 = vmatpush2.msra.mxu0 0.0
    %2227 = vmatprep.subr.mxu0 0.0
    %2228 = vmatpush2.msra.mxu0 0.0
    %2229 = vmatprep.subr.mxu0 0.0
    %2230 = vmatpush2.msra.mxu0 0.0
    %2231 = vmatprep.subr.mxu0 0.0
    %2232 = vmatpush2.msra.mxu0 0.0
    %2233 = vmatprep.subr.mxu0 0.0
    %2234 = vmatpush2.msra.mxu0 0.0
    %2235 = vmatprep.subr.mxu0 0.0
    %2236 = vmatpush2.msra.mxu0 0.0
    %2237 = vmatprep.subr.mxu0 0.0
    %2238 = vmatpush2.msra.mxu0 0.0
    %2239 = vmatprep.subr.mxu0 0.0
    %2240 = vmatpush2.msra.mxu0 0.0
    %2241 = vmatprep.mubr.f32.mxu0 0.0
    %2242 = vmatmul.mubr.f32.gmra.mxu0 %v2175
    %v2243 = vpop.f32.mrf.mxu0
    %v2244 = vadd.f32 0.0, %v2243
    %v2245 = vpop.f32.mrf.mxu0
    %2246 = vdwg.mxu0
    %v2247 = vadd.f32 %v2171, %v2244
    %v2248 = vxor.u32 %v2247, 2147483648
    %v2249 = vmul.f32 %v2248, 1.442695
    %v2250 = vpow.pop %v2249
    %v2251 = vadd.f32 %v2250, 1.0
    %v2252 = vrcp.pop %v2251
    %v2253 = vmul.f32 1.0, %v2252
    %v2254 = vtanh.pop %v2247
    %v2255 = vmul.f32 %v2253, %v1991
    %2257 = vrot.lane.b32.xlu0 %v2254, 64
    %v2258 = vpop.permute.xlu0 %2257
    %v2260 = vmul.f32 %v2253, %v2258
    %2262 = vrot.lane.b32.xlu0 %v2260, 32
    %v2263 = vpop.permute.xlu0 %2262
    %v2265 = vadd.f32 %v2255, %v2263
    %v2266 = vtanh.pop %v2265
    %2268 = vrot.lane.b32.xlu0 %v2266, 64
    %v2269 = vpop.permute.xlu0 %2268
    %v2271 = vmul.f32 %v2253, %v2269
    %v2272 = vld [vmem:[%s6] sm:$0xff]
    %v2273 = vld [vmem:[%s6 + $0x8] sm:$0xff]
    %v2274 = vld [vmem:[%s6 + $0x10] sm:$0xff]
    %v2275 = vld [vmem:[%s6 + $0x18] sm:$0xff]
    %v2276 = vld [vmem:[%s7] sm:$0x1]
    %v2278 = vlaneseq
    %v2279 = vshrl.u32 %v2278, 7
    %v2280 = vsub.s32 0, %v2279
    %v2281 = vrot.slane %v2276, %v2280
    %2284 = vrot.lane.b32.xlu0 %v2271, 32
    %v2285 = vpop.permute.xlu0 %2284
    %v2286 = vsel %vm55, %v2285, 0
    %2288 = vmatprep.subr.mxu0 0.0
    %2289 = vmatpush1.msra.mxu0 0.0
    %2290 = vmatprep.subr.mxu0 0.0
    %2291 = vmatpush1.msra.mxu0 0.0
    %2292 = vmatprep.subr.mxu0 0.0
    %2293 = vmatpush1.msra.mxu0 0.0
    %2294 = vmatprep.subr.mxu0 0.0
    %2295 = vmatpush1.msra.mxu0 0.0
    %2296 = vmatprep.subr.mxu0 0.0
    %2297 = vmatpush1.msra.mxu0 0.0
    %2298 = vmatprep.subr.mxu0 0.0
    %2299 = vmatpush1.msra.mxu0 0.0
    %2300 = vmatprep.subr.mxu0 0.0
    %2301 = vmatpush1.msra.mxu0 0.0
    %2302 = vmatprep.subr.mxu0 0.0
    %2303 = vmatpush1.msra.mxu0 0.0
    %2304 = vmatprep.subr.mxu0 0.0
    %2305 = vmatpush1.msra.mxu0 0.0
    %2306 = vmatprep.subr.mxu0 0.0
    %2307 = vmatpush1.msra.mxu0 0.0
    %2308 = vmatprep.subr.mxu0 0.0
    %2309 = vmatpush1.msra.mxu0 0.0
    %2310 = vmatprep.subr.mxu0 0.0
    %2311 = vmatpush1.msra.mxu0 0.0
    %2312 = vmatprep.subr.mxu0 0.0
    %2313 = vmatpush1.msra.mxu0 %v2275
    %2314 = vmatprep.subr.mxu0 0.0
    %2315 = vmatpush1.msra.mxu0 %v2274
    %2316 = vmatprep.subr.mxu0 0.0
    %2317 = vmatpush1.msra.mxu0 %v2273
    %2318 = vmatprep.subr.mxu0 0.0
    %2319 = vmatpush1.msra.mxu0 %v2272
    %2320 = vmatprep.subr.mxu0 0.0
    %2321 = vmatpush2.msra.mxu0 0.0
    %2322 = vmatprep.subr.mxu0 0.0
    %2323 = vmatpush2.msra.mxu0 0.0
    %2324 = vmatprep.subr.mxu0 0.0
    %2325 = vmatpush2.msra.mxu0 0.0
    %2326 = vmatprep.subr.mxu0 0.0
    %2327 = vmatpush2.msra.mxu0 0.0
    %2328 = vmatprep.subr.mxu0 0.0
    %2329 = vmatpush2.msra.mxu0 0.0
    %2330 = vmatprep.subr.mxu0 0.0
    %2331 = vmatpush2.msra.mxu0 0.0
    %2332 = vmatprep.subr.mxu0 0.0
    %2333 = vmatpush2.msra.mxu0 0.0
    %2334 = vmatprep.subr.mxu0 0.0
    %2335 = vmatpush2.msra.mxu0 0.0
    %2336 = vmatprep.subr.mxu0 0.0
    %2337 = vmatpush2.msra.mxu0 0.0
    %2338 = vmatprep.subr.mxu0 0.0
    %2339 = vmatpush2.msra.mxu0 0.0
    %2340 = vmatprep.subr.mxu0 0.0
    %2341 = vmatpush2.msra.mxu0 0.0
    %2342 = vmatprep.subr.mxu0 0.0
    %2343 = vmatpush2.msra.mxu0 0.0
    %2344 = vmatprep.subr.mxu0 0.0
    %2345 = vmatpush2.msra.mxu0 0.0
    %2346 = vmatprep.subr.mxu0 0.0
    %2347 = vmatpush2.msra.mxu0 0.0
    %2348 = vmatprep.subr.mxu0 0.0
    %2349 = vmatpush2.msra.mxu0 0.0
    %2350 = vmatprep.subr.mxu0 0.0
    %2351 = vmatpush2.msra.mxu0 0.0
    %2352 = vmatprep.mubr.f32.mxu0 0.0
    %2353 = vmatmul.mubr.f32.gmra.mxu0 %v2286
    %v2354 = vpop.f32.mrf.mxu0
    %v2355 = vadd.f32 %v2281, %v2354
    %v2356 = vpop.f32.mrf.mxu0
    %2357 = vdwg.mxu0
    %vm2358 = vcmask 74752
    %2359 = vst.msk [vmem:[#allocation2] sm:$0x3] %vm2358, %v2355
    // Predicated region
    $region34: #{_fused_forward.1} parent=1 // pred_check
      _
    $region35: #{_fused_forward.1} parent=1 // pred_check_branch
      %2361 = sbr.rel (0) target = $region37
    $region36: #{_fused_forward.1} parent=1 // pred_region
      %s2363 = ssub.s32 32, 32
      %2364 = vsyncadd [#allocation3], %s2363
      %s2366 = sshll.u32 [#allocation2], 4
      %s2367 = int_to_ptr.vmem [resolvable:$true] %s2366
      %2369 = dma.vmem_to_hbm [thread:$0]  %s2367, 32, %s8, [#allocation3]
    $region37: #{_fused_forward.1} parent=1 // pred_fallthru
      _
    // Predicated region
    $region38: #{_fused_forward.1} parent=1 // pred_check
      _
    $region39: #{_fused_forward.1} parent=1 // pred_check_branch
      %2371 = sbr.rel (0) target = $region41
    $region40: #{_fused_forward.1} parent=1 // pred_region
      %2372 = dma.done [#allocation3], 32
    $region41: #{_fused_forward.1} parent=1 // pred_fallthru
      _
    %2373 = vsyncpa [#allocation3], 1

</llo_original>
